<compile_context>
chip_gen: v6e
topology: v6e:2x2x1
jax: 0.10.0
libtpu: 0.0.40
codegen_flags: <defaults>
</compile_context>

<pallas_src>
import functools
import math

import jax
import jax.numpy as jnp
from jax.experimental import pallas as pl
from jax.experimental.pallas import tpu as pltpu

EPS = 1e-6


def _layernorm(x, g, b):
    # nn.LayerNorm semantics: biased variance, eps inside the sqrt. f32 math.
    mu = jnp.mean(x, axis=-1, keepdims=True)
    var = jnp.mean((x - mu) ** 2, axis=-1, keepdims=True)
    return (x - mu) * jax.lax.rsqrt(var + EPS) * g + b


def encoder_stack_kernel(x_ref, mask_ref,
                         ln_ref,                 # (1, 4, D): ln1_g, ln1_b, ln2_g, ln2_b
                         wqkv_ref, wo_ref, w1_ref, w2_ref,   # bf16 weights
                         b_ref,                  # (1, 4, Wmax): bqkv, bo, b1, b2 (zero-padded)
                         fn_ref,                 # (2, D): final LN gamma, beta
                         o_ref,
                         carry_ref,
                         *, heads):
    l = pl.program_id(1)
    n_layers = pl.num_programs(1)

    # Load src into the resident VMEM carry at the first layer of each batch row.
    @pl.when(l == 0)
    def _():
        carry_ref[...] = x_ref[0]

    x = carry_ref[...]                          # (S, D), f32 residual stream
    S, D = x.shape
    Dff = w1_ref.shape[2]
    dh = D // heads
    scale = 1.0 / math.sqrt(dh)

    # Unpack per-layer small params (static prefix slices, no relayout cost).
    ln = ln_ref[0]                              # (4, D)
    ln1g, ln1b = ln[0:1], ln[1:2]
    ln2g, ln2b = ln[2:3], ln[3:4]
    bia = b_ref[0]                              # (4, Wmax)
    bqkv = bia[0:1, :3 * D]
    bo = bia[1:2, :D]
    b1 = bia[2:3, :Dff]
    b2 = bia[3:4, :D]

    # Additive attention bias (hoisted out of the head computation), f32.
    mask = mask_ref[0]                          # (1, S)
    bias = jnp.where(mask == 0.0, -1e9, 0.0)    # (1, S) -> broadcast over q/heads

    # ---- self-attention sub-layer (pre-norm) ----
    # TODO(synk): EncoderLayer definition not given; canonical pre-norm layer assumed.
    xn = _layernorm(x, ln1g, ln1b)
    qkv = jnp.dot(xn.astype(jnp.bfloat16), wqkv_ref[0],
                  preferred_element_type=jnp.float32) + bqkv               # (S, 3D)
    q = qkv[:, :D] * scale                      # fold 1/sqrt(dh) into q once
    k = qkv[:, D:2 * D]
    v = qkv[:, 2 * D:]

    # Batched heads: (heads, S, dh), bf16 operands, f32 accumulation on MXU.
    qh = jnp.transpose(q.reshape(S, heads, dh), (1, 0, 2)).astype(jnp.bfloat16)
    kh = jnp.transpose(k.reshape(S, heads, dh), (1, 0, 2)).astype(jnp.bfloat16)
    vh = jnp.transpose(v.reshape(S, heads, dh), (1, 0, 2)).astype(jnp.bfloat16)

    s = jnp.einsum('hqd,hkd->hqk', qh, kh,
                   preferred_element_type=jnp.float32)                      # (H,S,S)
    s = s + bias[None, :, :]
    s = s - jnp.max(s, axis=-1, keepdims=True)                              # stable
    e = jnp.exp(s)
    p = e * pl.reciprocal(jnp.sum(e, axis=-1, keepdims=True), approx=True)

    ah = jnp.einsum('hqk,hkd->hqd', p.astype(jnp.bfloat16), vh,
                    preferred_element_type=jnp.float32)                     # (H,S,dh)
    attn = jnp.transpose(ah, (1, 0, 2)).reshape(S, D)
    attn = jnp.dot(attn.astype(jnp.bfloat16), wo_ref[0],
                   preferred_element_type=jnp.float32) + bo
    x1 = x + attn                               # dropout == identity at inference

    # ---- feed-forward sub-layer (pre-norm) ----
    xn2 = _layernorm(x1, ln2g, ln2b)
    h1 = jnp.maximum(
        jnp.dot(xn2.astype(jnp.bfloat16), w1_ref[0],
                preferred_element_type=jnp.float32) + b1, 0.0)
    ff = jnp.dot(h1.astype(jnp.bfloat16), w2_ref[0],
                 preferred_element_type=jnp.float32) + b2
    x2 = x1 + ff

    carry_ref[...] = x2

    # Final nn.LayerNorm(d_model, eps=1e-6) fused into the last layer step.
    @pl.when(l == n_layers - 1)
    def _():
        o_ref[0] = _layernorm(x2, fn_ref[0:1], fn_ref[1:2])


def encoder_forward(src, mask, stacked, final_ln, heads):
    B, S, D = src.shape
    L, _, threeD = stacked["wqkv"].shape
    Dff = stacked["w1"].shape[2]
    Wmax = stacked["bias"].shape[2]

    bmap = lambda b, l: (b, 0, 0)     # per-batch blocks, resident across l
    lmap = lambda b, l: (l, 0, 0)     # per-layer weight blocks (prefetched)
    cmap = lambda b, l: (0, 0)        # constants (stay resident in VMEM)

    kernel = functools.partial(encoder_stack_kernel, heads=heads)
    return pl.pallas_call(
        kernel,
        out_shape=jax.ShapeDtypeStruct((B, S, D), jnp.float32),
        grid=(B, L),
        in_specs=[
            pl.BlockSpec((1, S, D), bmap),          # src
            pl.BlockSpec((1, 1, S), bmap),          # mask
            pl.BlockSpec((1, 4, D), lmap),          # packed LN params
            pl.BlockSpec((1, D, 3 * D), lmap),      # Wqkv (bf16)
            pl.BlockSpec((1, D, D), lmap),          # Wo (bf16)
            pl.BlockSpec((1, D, Dff), lmap),        # W1 (bf16)
            pl.BlockSpec((1, Dff, D), lmap),        # W2 (bf16)
            pl.BlockSpec((1, 4, Wmax), lmap),       # packed biases
            pl.BlockSpec((2, D), cmap),             # final LN gamma/beta
        ],
        out_specs=pl.BlockSpec((1, S, D), bmap),
        scratch_shapes=[pltpu.VMEM((S, D), jnp.float32)],
        compiler_params=pltpu.CompilerParams(
            dimension_semantics=("parallel", "arbitrary")),
    )(src, mask,
      stacked["ln"],
      stacked["wqkv"], stacked["wo"], stacked["w1"], stacked["w2"],
      stacked["bias"],
      final_ln)


def init_params(key, n_layers, d_model, d_ff):
    """Per-layer params stacked along a leading L axis; matmul weights in bf16."""
    wmax = max(3 * d_model, d_ff, d_model)

    def pad(v):
        return jnp.pad(v, ((0, 0), (0, wmax - v.shape[1])))

    layers = []
    for _ in range(n_layers):
        key, *ks = jax.random.split(key, 15)
        sd = 1.0 / math.sqrt(d_model)
        sf = 1.0 / math.sqrt(d_ff)
        wq = jax.random.normal(ks[0], (d_model, d_model), jnp.float32) * sd
        wk = jax.random.normal(ks[1], (d_model, d_model), jnp.float32) * sd
        wv = jax.random.normal(ks[2], (d_model, d_model), jnp.float32) * sd
        wo = jax.random.normal(ks[3], (d_model, d_model), jnp.float32) * sd
        w1 = jax.random.normal(ks[4], (d_model, d_ff), jnp.float32) * sd
        w2 = jax.random.normal(ks[5], (d_ff, d_model), jnp.float32) * sf
        ln = jnp.stack([
            1.0 + 0.1 * jax.random.normal(ks[6], (d_model,), jnp.float32),   # ln1_g
            0.1 * jax.random.normal(ks[7], (d_model,), jnp.float32),         # ln1_b
            1.0 + 0.1 * jax.random.normal(ks[8], (d_model,), jnp.float32),   # ln2_g
            0.1 * jax.random.normal(ks[9], (d_model,), jnp.float32),         # ln2_b
        ], axis=0)                                                           # (4, D)
        bqkv = 0.02 * jax.random.normal(ks[10], (1, 3 * d_model), jnp.float32)
        bo = 0.02 * jax.random.normal(ks[11], (1, d_model), jnp.float32)
        b1 = 0.02 * jax.random.normal(ks[12], (1, d_ff), jnp.float32)
        b2 = 0.02 * jax.random.normal(ks[13], (1, d_model), jnp.float32)
        bias = jnp.concatenate([pad(bqkv), pad(bo), pad(b1), pad(b2)], axis=0)  # (4, Wmax)
        layers.append(dict(
            ln=ln,
            wqkv=jnp.concatenate([wq, wk, wv], axis=1).astype(jnp.bfloat16),
            wo=wo.astype(jnp.bfloat16),
            w1=w1.astype(jnp.bfloat16),
            w2=w2.astype(jnp.bfloat16),
            bias=bias,
        ))
    stacked = {k: jnp.stack([lp[k] for lp in layers], axis=0) for k in layers[0]}
    key, kg, kb = jax.random.split(key, 3)
    final_ln = jnp.stack([
        1.0 + 0.1 * jax.random.normal(kg, (d_model,), jnp.float32),
        0.1 * jax.random.normal(kb, (d_model,), jnp.float32),
    ], axis=0)                                                               # (2, D)
    return stacked, final_ln


def encoder_reference(src, mask, stacked, final_ln, heads):
    """Pure-JAX f32 reference of the same architecture (for sanity check)."""
    B, S, D = src.shape
    L = stacked["wqkv"].shape[0]
    Dff = stacked["w1"].shape[2]
    dh = D // heads
    bias = jnp.where(mask == 0.0, -1e9, 0.0)                       # (B,1,S)
    x = src
    for l in range(L):
        ln = stacked["ln"][l]
        bv = stacked["bias"][l]
        bqkv, bo = bv[0:1, :3 * D], bv[1:2, :D]
        b1, b2 = bv[2:3, :Dff], bv[3:4, :D]
        xn = _layernorm(x, ln[0], ln[1])
        qkv = xn @ stacked["wqkv"][l].astype(jnp.float32) + bqkv
        q, k, v = qkv[..., :D], qkv[..., D:2 * D], qkv[..., 2 * D:]
        q = q / math.sqrt(dh)
        qh = q.reshape(B, S, heads, dh).transpose(0, 2, 1, 3)
        kh = k.reshape(B, S, heads, dh).transpose(0, 2, 1, 3)
        vh = v.reshape(B, S, heads, dh).transpose(0, 2, 1, 3)
        s = jnp.einsum('bhqd,bhkd->bhqk', qh, kh) + bias[:, None, :, :]
        p = jax.nn.softmax(s, axis=-1)
        ah = jnp.einsum('bhqk,bhkd->bhqd', p, vh)
        attn = ah.transpose(0, 2, 1, 3).reshape(B, S, D)
        attn = attn @ stacked["wo"][l].astype(jnp.float32) + bo
        x1 = x + attn
        xn2 = _layernorm(x1, ln[2], ln[3])
        h1 = jax.nn.relu(xn2 @ stacked["w1"][l].astype(jnp.float32) + b1)
        x = x1 + h1 @ stacked["w2"][l].astype(jnp.float32) + b2
    return _layernorm(x, final_ln[0], final_ln[1])


if __name__ == "__main__":
    B, S, D, HEADS, N_LAYER = 2, 8, 32, 4, 2
    D_FF = 4 * D  # TODO(synk): FeedForward hidden width not given; using 4*d_model.

    key = jax.random.PRNGKey(0)
    k_src, k_params = jax.random.split(key)

    # self.src (stored at construction) and the attention mask.
    src = jax.random.normal(k_src, (B, S, D), jnp.float32)
    mask = jnp.ones((B, 1, S), jnp.float32)
    mask = mask.at[1, 0, 6:].set(0.0)  # mask the last 2 keys of batch element 1

    stacked, final_ln = init_params(k_params, N_LAYER, D, D_FF)

    out = encoder_forward(src, mask, stacked, final_ln, HEADS)
    out = jax.block_until_ready(out)

    assert out.shape == (B, S, D) and out.dtype == jnp.float32
    assert bool(jnp.all(jnp.isfinite(out)))

    # Loose sanity check vs f32 reference (kernel uses bf16 matmul operands).
    ref = encoder_reference(src, mask, stacked, final_ln, HEADS)
    max_err = float(jnp.max(jnp.abs(out - ref)))
    assert max_err < 1e-1, f"max abs error too large: {max_err}"

    print("KERNEL_OK")
</pallas_src>

<mosaic_0001>
module attributes {stable_mosaic.version = 11 : i64} {
  func.func @encoder_stack_kernel(%arg0: i32, %arg1: i32, %arg2: memref<1x8x32xf32, #tpu.memory_space<vmem>>, %arg3: memref<1x1x8xf32, #tpu.memory_space<vmem>>, %arg4: memref<1x4x32xf32, #tpu.memory_space<vmem>>, %arg5: memref<1x32x96xbf16, #tpu.memory_space<vmem>>, %arg6: memref<1x32x32xbf16, #tpu.memory_space<vmem>>, %arg7: memref<1x32x128xbf16, #tpu.memory_space<vmem>>, %arg8: memref<1x128x32xbf16, #tpu.memory_space<vmem>>, %arg9: memref<1x4x128xf32, #tpu.memory_space<vmem>>, %arg10: memref<2x32xf32, #tpu.memory_space<vmem>>, %arg11: memref<1x8x32xf32, #tpu.memory_space<vmem>>, %arg12: memref<8x32xf32, #tpu.memory_space<vmem>>) attributes {dimension_semantics = [#tpu.dimension_semantics<parallel>, #tpu.dimension_semantics<arbitrary>], iteration_bounds = array<i64: 2, 2>, scalar_prefetch = 0 : i64, scratch_operands = 1 : i64, tpu.core_type = #tpu.core_type<tc>, window_params = [{transform_indices = @transform_0, window_bounds = array<i64: 1, 8, 32>}, {transform_indices = @transform_1, window_bounds = array<i64: 1, 1, 8>}, {transform_indices = @transform_2, window_bounds = array<i64: 1, 4, 32>}, {transform_indices = @transform_3, window_bounds = array<i64: 1, 32, 96>}, {transform_indices = @transform_4, window_bounds = array<i64: 1, 32, 32>}, {transform_indices = @transform_5, window_bounds = array<i64: 1, 32, 128>}, {transform_indices = @transform_6, window_bounds = array<i64: 1, 128, 32>}, {transform_indices = @transform_7, window_bounds = array<i64: 1, 4, 128>}, {pipeline_mode = #tpu.pipeline_mode<synchronous>, transform_indices = @transform_8, window_bounds = array<i64: 2, 32>}, {transform_indices = @transform_9, window_bounds = array<i64: 1, 8, 32>}]} {
    %c0_i32 = arith.constant 0 : i32
    %0 = arith.cmpi eq, %arg1, %c0_i32 : i32
    %1 = arith.extui %0 : i1 to i32
    %c0_i32_0 = arith.constant 0 : i32
    %2 = arith.cmpi ne, %1, %c0_i32_0 : i32
    scf.if %2 {
      %c0_48 = arith.constant 0 : index
      %c0_49 = arith.constant 0 : index
      %c0_50 = arith.constant 0 : index
      %131 = vector.load %arg2[%c0_48, %c0_49, %c0_50] : memref<1x8x32xf32, #tpu.memory_space<vmem>>, vector<1x8x32xf32>
      %132 = vector.shape_cast %131 : vector<1x8x32xf32> to vector<8x32xf32>
      %c0_51 = arith.constant 0 : index
      %c0_52 = arith.constant 0 : index
      %133 = vector.load %arg12[%c0_51, %c0_52] : memref<8x32xf32, #tpu.memory_space<vmem>>, vector<8x32xf32>
      tpu.vector_store %arg12[%c0_51, %c0_52], %132 {strides = array<i32>} : memref<8x32xf32, #tpu.memory_space<vmem>>, vector<8x32xf32>,
    } else {
    }
    %c0 = arith.constant 0 : index
    %c0_1 = arith.constant 0 : index
    %3 = vector.load %arg12[%c0, %c0_1] : memref<8x32xf32, #tpu.memory_space<vmem>>, vector<8x32xf32>
    %c0_2 = arith.constant 0 : index
    %c0_3 = arith.constant 0 : index
    %c0_4 = arith.constant 0 : index
    %4 = vector.load %arg4[%c0_2, %c0_3, %c0_4] : memref<1x4x32xf32, #tpu.memory_space<vmem>>, vector<1x4x32xf32>
    %5 = vector.shape_cast %4 : vector<1x4x32xf32> to vector<4x32xf32>
    %6 = vector.extract_strided_slice %5 {offsets = [0, 0], sizes = [1, 32], strides = [1, 1]} : vector<4x32xf32> to vector<1x32xf32>
    %7 = vector.extract_strided_slice %5 {offsets = [1, 0], sizes = [1, 32], strides = [1, 1]} : vector<4x32xf32> to vector<1x32xf32>
    %8 = vector.extract_strided_slice %5 {offsets = [2, 0], sizes = [1, 32], strides = [1, 1]} : vector<4x32xf32> to vector<1x32xf32>
    %9 = vector.extract_strided_slice %5 {offsets = [3, 0], sizes = [1, 32], strides = [1, 1]} : vector<4x32xf32> to vector<1x32xf32>
    %c0_5 = arith.constant 0 : index
    %c0_6 = arith.constant 0 : index
    %c0_7 = arith.constant 0 : index
    %10 = vector.load %arg9[%c0_5, %c0_6, %c0_7] : memref<1x4x128xf32, #tpu.memory_space<vmem>>, vector<1x4x128xf32>
    %11 = vector.shape_cast %10 : vector<1x4x128xf32> to vector<4x128xf32>
    %12 = vector.extract_strided_slice %11 {offsets = [0, 0], sizes = [1, 96], strides = [1, 1]} : vector<4x128xf32> to vector<1x96xf32>
    %13 = vector.extract_strided_slice %11 {offsets = [1, 0], sizes = [1, 32], strides = [1, 1]} : vector<4x128xf32> to vector<1x32xf32>
    %14 = vector.extract_strided_slice %11 {offsets = [2, 0], sizes = [1, 128], strides = [1, 1]} : vector<4x128xf32> to vector<1x128xf32>
    %15 = vector.extract_strided_slice %11 {offsets = [3, 0], sizes = [1, 32], strides = [1, 1]} : vector<4x128xf32> to vector<1x32xf32>
    %c0_8 = arith.constant 0 : index
    %c0_9 = arith.constant 0 : index
    %c0_10 = arith.constant 0 : index
    %16 = vector.load %arg3[%c0_8, %c0_9, %c0_10] : memref<1x1x8xf32, #tpu.memory_space<vmem>>, vector<1x1x8xf32>
    %17 = vector.shape_cast %16 : vector<1x1x8xf32> to vector<1x8xf32>
    %cst = arith.constant 0.000000e+00 : f32
    %18 = vector.broadcast %cst : f32 to vector<1x8xf32>
    %19 = arith.cmpf oeq, %17, %18 : vector<1x8xf32>
    %cst_11 = arith.constant -1.000000e+09 : f32
    %cst_12 = arith.constant 0.000000e+00 : f32
    %20 = vector.broadcast %cst_11 : f32 to vector<1x8xf32>
    %21 = vector.broadcast %cst_12 : f32 to vector<1x8xf32>
    %22 = arith.select %19, %20, %21 : vector<1x8xi1>, vector<1x8xf32>
    %cst_13 = arith.constant dense<0.000000e+00> : vector<8xf32>
    %23 = vector.multi_reduction <add>, %3, %cst_13 [1] : vector<8x32xf32> to vector<8xf32>
    %24 = vector.shape_cast %23 : vector<8xf32> to vector<8x1xf32>
    %cst_14 = arith.constant 3.200000e+01 : f32
    %25 = vector.broadcast %cst_14 : f32 to vector<8x1xf32>
    %26 = arith.divf %24, %25 : vector<8x1xf32>
    %27 = vector.broadcast %26 : vector<8x1xf32> to vector<8x32xf32>
    %28 = arith.subf %3, %27 : vector<8x32xf32>
    %29 = arith.mulf %28, %28 : vector<8x32xf32>
    %cst_15 = arith.constant dense<0.000000e+00> : vector<8xf32>
    %30 = vector.multi_reduction <add>, %29, %cst_15 [1] : vector<8x32xf32> to vector<8xf32>
    %31 = vector.shape_cast %30 : vector<8xf32> to vector<8x1xf32>
    %cst_16 = arith.constant 3.200000e+01 : f32
    %32 = vector.broadcast %cst_16 : f32 to vector<8x1xf32>
    %33 = arith.divf %31, %32 : vector<8x1xf32>
    %34 = vector.broadcast %26 : vector<8x1xf32> to vector<8x32xf32>
    %35 = arith.subf %3, %34 : vector<8x32xf32>
    %cst_17 = arith.constant 9.99999997E-7 : f32
    %36 = vector.broadcast %cst_17 : f32 to vector<8x1xf32>
    %37 = arith.addf %33, %36 : vector<8x1xf32>
    %38 = math.rsqrt %37 : vector<8x1xf32>
    %39 = vector.broadcast %38 : vector<8x1xf32> to vector<8x32xf32>
    %40 = arith.mulf %35, %39 : vector<8x32xf32>
    %41 = vector.broadcast %6 : vector<1x32xf32> to vector<8x32xf32>
    %42 = arith.mulf %40, %41 : vector<8x32xf32>
    %43 = vector.broadcast %7 : vector<1x32xf32> to vector<8x32xf32>
    %44 = arith.addf %42, %43 : vector<8x32xf32>
    %45 = arith.truncf %44 : vector<8x32xf32> to vector<8x32xbf16>
    %c0_18 = arith.constant 0 : index
    %c0_19 = arith.constant 0 : index
    %c0_20 = arith.constant 0 : index
    %46 = vector.load %arg5[%c0_18, %c0_19, %c0_20] : memref<1x32x96xbf16, #tpu.memory_space<vmem>>, vector<1x32x96xbf16>
    %47 = vector.shape_cast %46 : vector<1x32x96xbf16> to vector<32x96xbf16>
    %cst_21 = arith.constant dense<0.000000e+00> : vector<8x96xf32>
    %48 = tpu.matmul %45, %47, %cst_21 {dimension_numbers = #tpu.dot_dimension_numbers<[1], [0], [0], [1], [0, 0, 1, 1], [], []>} : vector<8x32xbf16>, vector<32x96xbf16>, vector<8x96xf32> -> vector<8x96xf32>
    %49 = vector.broadcast %12 : vector<1x96xf32> to vector<8x96xf32>
    %50 = arith.addf %48, %49 : vector<8x96xf32>
    %51 = vector.extract_strided_slice %50 {offsets = [0, 0], sizes = [8, 32], strides = [1, 1]} : vector<8x96xf32> to vector<8x32xf32>
    %cst_22 = arith.constant 0.353553385 : f32
    %52 = vector.broadcast %cst_22 : f32 to vector<8x32xf32>
    %53 = arith.mulf %51, %52 : vector<8x32xf32>
    %54 = vector.extract_strided_slice %50 {offsets = [0, 32], sizes = [8, 32], strides = [1, 1]} : vector<8x96xf32> to vector<8x32xf32>
    %55 = vector.extract_strided_slice %50 {offsets = [0, 64], sizes = [8, 32], strides = [1, 1]} : vector<8x96xf32> to vector<8x32xf32>
    %56 = vector.shape_cast %53 : vector<8x32xf32> to vector<8x4x8xf32>
    %57 = tpu.transpose %56, [1, 0, 2] : vector<8x4x8xf32> -> vector<4x8x8xf32>
    %58 = arith.truncf %57 : vector<4x8x8xf32> to vector<4x8x8xbf16>
    %59 = vector.shape_cast %54 : vector<8x32xf32> to vector<8x4x8xf32>
    %60 = tpu.transpose %59, [1, 0, 2] : vector<8x4x8xf32> -> vector<4x8x8xf32>
    %61 = arith.truncf %60 : vector<4x8x8xf32> to vector<4x8x8xbf16>
    %62 = vector.shape_cast %55 : vector<8x32xf32> to vector<8x4x8xf32>
    %63 = tpu.transpose %62, [1, 0, 2] : vector<8x4x8xf32> -> vector<4x8x8xf32>
    %64 = arith.truncf %63 : vector<4x8x8xf32> to vector<4x8x8xbf16>
    "tpu.trace_start"() <{level = 10 : i32, message = "hqd,hkd->hqk"}> : () -> ()
    %cst_23 = arith.constant dense<0.000000e+00> : vector<4x8x8xf32>
    %65 = tpu.matmul %58, %61, %cst_23 {dimension_numbers = #tpu.dot_dimension_numbers<[2], [2], [1], [1], [0, 0, 0, 1, 1, 1], [0], [0]>} : vector<4x8x8xbf16>, vector<4x8x8xbf16>, vector<4x8x8xf32> -> vector<4x8x8xf32>
    "tpu.trace_stop"() : () -> ()
    %66 = vector.shape_cast %22 : vector<1x8xf32> to vector<1x1x8xf32>
    %67 = vector.broadcast %66 : vector<1x1x8xf32> to vector<4x8x8xf32>
    %68 = arith.addf %65, %67 : vector<4x8x8xf32>
    %cst_24 = arith.constant dense<0xFF800000> : vector<4x8xf32>
    %69 = vector.multi_reduction <maximumf>, %68, %cst_24 [2] : vector<4x8x8xf32> to vector<4x8xf32>
    %70 = vector.shape_cast %69 : vector<4x8xf32> to vector<4x8x1xf32>
    %71 = vector.broadcast %70 : vector<4x8x1xf32> to vector<4x8x8xf32>
    %72 = arith.subf %68, %71 : vector<4x8x8xf32>
    %73 = math.exp %72 : vector<4x8x8xf32>
    %cst_25 = arith.constant dense<0.000000e+00> : vector<4x8xf32>
    %74 = vector.multi_reduction <add>, %73, %cst_25 [2] : vector<4x8x8xf32> to vector<4x8xf32>
    %75 = vector.shape_cast %74 : vector<4x8xf32> to vector<4x8x1xf32>
    %76 = tpu.reciprocal %75 {approx = true} : vector<4x8x1xf32> -> vector<4x8x1xf32>
    %77 = vector.broadcast %76 : vector<4x8x1xf32> to vector<4x8x8xf32>
    %78 = arith.mulf %73, %77 : vector<4x8x8xf32>
    %79 = arith.truncf %78 : vector<4x8x8xf32> to vector<4x8x8xbf16>
    "tpu.trace_start"() <{level = 10 : i32, message = "hqk,hkd->hqd"}> : () -> ()
    %cst_26 = arith.constant dense<0.000000e+00> : vector<4x8x8xf32>
    %80 = tpu.matmul %79, %64, %cst_26 {dimension_numbers = #tpu.dot_dimension_numbers<[2], [1], [1], [2], [0, 0, 0, 1, 1, 2], [0], [0]>} : vector<4x8x8xbf16>, vector<4x8x8xbf16>, vector<4x8x8xf32> -> vector<4x8x8xf32>
    "tpu.trace_stop"() : () -> ()
    %81 = tpu.transpose %80, [1, 0, 2] : vector<4x8x8xf32> -> vector<8x4x8xf32>
    %82 = vector.shape_cast %81 : vector<8x4x8xf32> to vector<8x32xf32>
    %83 = arith.truncf %82 : vector<8x32xf32> to vector<8x32xbf16>
    %c0_27 = arith.constant 0 : index
    %c0_28 = arith.constant 0 : index
    %c0_29 = arith.constant 0 : index
    %84 = vector.load %arg6[%c0_27, %c0_28, %c0_29] : memref<1x32x32xbf16, #tpu.memory_space<vmem>>, vector<1x32x32xbf16>
    %85 = vector.shape_cast %84 : vector<1x32x32xbf16> to vector<32x32xbf16>
    %cst_30 = arith.constant dense<0.000000e+00> : vector<8x32xf32>
    %86 = tpu.matmul %83, %85, %cst_30 {dimension_numbers = #tpu.dot_dimension_numbers<[1], [0], [0], [1], [0, 0, 1, 1], [], []>} : vector<8x32xbf16>, vector<32x32xbf16>, vector<8x32xf32> -> vector<8x32xf32>
    %87 = vector.broadcast %13 : vector<1x32xf32> to vector<8x32xf32>
    %88 = arith.addf %86, %87 : vector<8x32xf32>
    %89 = arith.addf %3, %88 : vector<8x32xf32>
    %cst_31 = arith.constant dense<0.000000e+00> : vector<8xf32>
    %90 = vector.multi_reduction <add>, %89, %cst_31 [1] : vector<8x32xf32> to vector<8xf32>
    %91 = vector.shape_cast %90 : vector<8xf32> to vector<8x1xf32>
    %cst_32 = arith.constant 3.200000e+01 : f32
    %92 = vector.broadcast %cst_32 : f32 to vector<8x1xf32>
    %93 = arith.divf %91, %92 : vector<8x1xf32>
    %94 = vector.broadcast %93 : vector<8x1xf32> to vector<8x32xf32>
    %95 = arith.subf %89, %94 : vector<8x32xf32>
    %96 = arith.mulf %95, %95 : vector<8x32xf32>
    %cst_33 = arith.constant dense<0.000000e+00> : vector<8xf32>
    %97 = vector.multi_reduction <add>, %96, %cst_33 [1] : vector<8x32xf32> to vector<8xf32>
    %98 = vector.shape_cast %97 : vector<8xf32> to vector<8x1xf32>
    %cst_34 = arith.constant 3.200000e+01 : f32
    %99 = vector.broadcast %cst_34 : f32 to vector<8x1xf32>
    %100 = arith.divf %98, %99 : vector<8x1xf32>
    %101 = vector.broadcast %93 : vector<8x1xf32> to vector<8x32xf32>
    %102 = arith.subf %89, %101 : vector<8x32xf32>
    %cst_35 = arith.constant 9.99999997E-7 : f32
    %103 = vector.broadcast %cst_35 : f32 to vector<8x1xf32>
    %104 = arith.addf %100, %103 : vector<8x1xf32>
    %105 = math.rsqrt %104 : vector<8x1xf32>
    %106 = vector.broadcast %105 : vector<8x1xf32> to vector<8x32xf32>
    %107 = arith.mulf %102, %106 : vector<8x32xf32>
    %108 = vector.broadcast %8 : vector<1x32xf32> to vector<8x32xf32>
    %109 = arith.mulf %107, %108 : vector<8x32xf32>
    %110 = vector.broadcast %9 : vector<1x32xf32> to vector<8x32xf32>
    %111 = arith.addf %109, %110 : vector<8x32xf32>
    %112 = arith.truncf %111 : vector<8x32xf32> to vector<8x32xbf16>
    %c0_36 = arith.constant 0 : index
    %c0_37 = arith.constant 0 : index
    %c0_38 = arith.constant 0 : index
    %113 = vector.load %arg7[%c0_36, %c0_37, %c0_38] : memref<1x32x128xbf16, #tpu.memory_space<vmem>>, vector<1x32x128xbf16>
    %114 = vector.shape_cast %113 : vector<1x32x128xbf16> to vector<32x128xbf16>
    %cst_39 = arith.constant dense<0.000000e+00> : vector<8x128xf32>
    %115 = tpu.matmul %112, %114, %cst_39 {dimension_numbers = #tpu.dot_dimension_numbers<[1], [0], [0], [1], [0, 0, 1, 1], [], []>} : vector<8x32xbf16>, vector<32x128xbf16>, vector<8x128xf32> -> vector<8x128xf32>
    %116 = vector.broadcast %14 : vector<1x128xf32> to vector<8x128xf32>
    %117 = arith.addf %115, %116 : vector<8x128xf32>
    %cst_40 = arith.constant 0.000000e+00 : f32
    %118 = vector.broadcast %cst_40 : f32 to vector<8x128xf32>
    %119 = arith.maximumf %117, %118 : vector<8x128xf32>
    %120 = arith.truncf %119 : vector<8x128xf32> to vector<8x128xbf16>
    %c0_41 = arith.constant 0 : index
    %c0_42 = arith.constant 0 : index
    %c0_43 = arith.constant 0 : index
    %121 = vector.load %arg8[%c0_41, %c0_42, %c0_43] : memref<1x128x32xbf16, #tpu.memory_space<vmem>>, vector<1x128x32xbf16>
    %122 = vector.shape_cast %121 : vector<1x128x32xbf16> to vector<128x32xbf16>
    %cst_44 = arith.constant dense<0.000000e+00> : vector<8x32xf32>
    %123 = tpu.matmul %120, %122, %cst_44 {dimension_numbers = #tpu.dot_dimension_numbers<[1], [0], [0], [1], [0, 0, 1, 1], [], []>} : vector<8x128xbf16>, vector<128x32xbf16>, vector<8x32xf32> -> vector<8x32xf32>
    %124 = vector.broadcast %15 : vector<1x32xf32> to vector<8x32xf32>
    %125 = arith.addf %123, %124 : vector<8x32xf32>
    %126 = arith.addf %89, %125 : vector<8x32xf32>
    %c0_45 = arith.constant 0 : index
    %c0_46 = arith.constant 0 : index
    %127 = vector.load %arg12[%c0_45, %c0_46] : memref<8x32xf32, #tpu.memory_space<vmem>>, vector<8x32xf32>
    tpu.vector_store %arg12[%c0_45, %c0_46], %126 {strides = array<i32>} : memref<8x32xf32, #tpu.memory_space<vmem>>, vector<8x32xf32>,
    %c1_i32 = arith.constant 1 : i32
    %128 = arith.cmpi eq, %arg1, %c1_i32 : i32
    %129 = arith.extui %128 : i1 to i32
    %c0_i32_47 = arith.constant 0 : i32
    %130 = arith.cmpi ne, %129, %c0_i32_47 : i32
    scf.if %130 {
      %c0_48 = arith.constant 0 : index
      %c0_49 = arith.constant 0 : index
      %131 = vector.load %arg10[%c0_48, %c0_49] : memref<2x32xf32, #tpu.memory_space<vmem>>, vector<1x32xf32>
      %c1 = arith.constant 1 : index
      %c0_50 = arith.constant 0 : index
      %132 = vector.load %arg10[%c1, %c0_50] : memref<2x32xf32, #tpu.memory_space<vmem>>, vector<1x32xf32>
      %cst_51 = arith.constant dense<0.000000e+00> : vector<8xf32>
      %133 = vector.multi_reduction <add>, %126, %cst_51 [1] : vector<8x32xf32> to vector<8xf32>
      %134 = vector.shape_cast %133 : vector<8xf32> to vector<8x1xf32>
      %cst_52 = arith.constant 3.200000e+01 : f32
      %135 = vector.broadcast %cst_52 : f32 to vector<8x1xf32>
      %136 = arith.divf %134, %135 : vector<8x1xf32>
      %137 = vector.broadcast %136 : vector<8x1xf32> to vector<8x32xf32>
      %138 = arith.subf %126, %137 : vector<8x32xf32>
      %139 = arith.mulf %138, %138 : vector<8x32xf32>
      %cst_53 = arith.constant dense<0.000000e+00> : vector<8xf32>
      %140 = vector.multi_reduction <add>, %139, %cst_53 [1] : vector<8x32xf32> to vector<8xf32>
      %141 = vector.shape_cast %140 : vector<8xf32> to vector<8x1xf32>
      %cst_54 = arith.constant 3.200000e+01 : f32
      %142 = vector.broadcast %cst_54 : f32 to vector<8x1xf32>
      %143 = arith.divf %141, %142 : vector<8x1xf32>
      %144 = vector.broadcast %136 : vector<8x1xf32> to vector<8x32xf32>
      %145 = arith.subf %126, %144 : vector<8x32xf32>
      %cst_55 = arith.constant 9.99999997E-7 : f32
      %146 = vector.broadcast %cst_55 : f32 to vector<8x1xf32>
      %147 = arith.addf %143, %146 : vector<8x1xf32>
      %148 = math.rsqrt %147 : vector<8x1xf32>
      %149 = vector.broadcast %148 : vector<8x1xf32> to vector<8x32xf32>
      %150 = arith.mulf %145, %149 : vector<8x32xf32>
      %151 = vector.broadcast %131 : vector<1x32xf32> to vector<8x32xf32>
      %152 = arith.mulf %150, %151 : vector<8x32xf32>
      %153 = vector.broadcast %132 : vector<1x32xf32> to vector<8x32xf32>
      %154 = arith.addf %152, %153 : vector<8x32xf32>
      %c0_56 = arith.constant 0 : index
      %c0_57 = arith.constant 0 : index
      %c0_58 = arith.constant 0 : index
      %155 = vector.load %arg11[%c0_56, %c0_57, %c0_58] : memref<1x8x32xf32, #tpu.memory_space<vmem>>, vector<1x8x32xf32>
      %156 = vector.shape_cast %155 : vector<1x8x32xf32> to vector<8x32xf32>
      %157 = vector.shape_cast %154 : vector<8x32xf32> to vector<1x8x32xf32>
      tpu.vector_store %arg11[%c0_56, %c0_57, %c0_58], %157 {strides = array<i32>} : memref<1x8x32xf32, #tpu.memory_space<vmem>>, vector<1x8x32xf32>,
    } else {
    }
    return
  }
  func.func @transform_0(%arg0: i32, %arg1: i32) -> (i32, i32, i32) {
    %c0_i32 = arith.constant 0 : i32
    %c0_i32_0 = arith.constant 0 : i32
    %c0_i32_1 = arith.constant 0 : i32
    return %arg0, %c0_i32, %c0_i32_0 : i32, i32, i32
  }
  func.func @transform_1(%arg0: i32, %arg1: i32) -> (i32, i32, i32) {
    %c0_i32 = arith.constant 0 : i32
    %c0_i32_0 = arith.constant 0 : i32
    %c0_i32_1 = arith.constant 0 : i32
    return %arg0, %c0_i32, %c0_i32_0 : i32, i32, i32
  }
  func.func @transform_2(%arg0: i32, %arg1: i32) -> (i32, i32, i32) {
    %c0_i32 = arith.constant 0 : i32
    %c0_i32_0 = arith.constant 0 : i32
    %c0_i32_1 = arith.constant 0 : i32
    return %arg1, %c0_i32, %c0_i32_0 : i32, i32, i32
  }
  func.func @transform_3(%arg0: i32, %arg1: i32) -> (i32, i32, i32) {
    %c0_i32 = arith.constant 0 : i32
    %c0_i32_0 = arith.constant 0 : i32
    %c0_i32_1 = arith.constant 0 : i32
    return %arg1, %c0_i32, %c0_i32_0 : i32, i32, i32
  }
  func.func @transform_4(%arg0: i32, %arg1: i32) -> (i32, i32, i32) {
    %c0_i32 = arith.constant 0 : i32
    %c0_i32_0 = arith.constant 0 : i32
    %c0_i32_1 = arith.constant 0 : i32
    return %arg1, %c0_i32, %c0_i32_0 : i32, i32, i32
  }
  func.func @transform_5(%arg0: i32, %arg1: i32) -> (i32, i32, i32) {
    %c0_i32 = arith.constant 0 : i32
    %c0_i32_0 = arith.constant 0 : i32
    %c0_i32_1 = arith.constant 0 : i32
    return %arg1, %c0_i32, %c0_i32_0 : i32, i32, i32
  }
  func.func @transform_6(%arg0: i32, %arg1: i32) -> (i32, i32, i32) {
    %c0_i32 = arith.constant 0 : i32
    %c0_i32_0 = arith.constant 0 : i32
    %c0_i32_1 = arith.constant 0 : i32
    return %arg1, %c0_i32, %c0_i32_0 : i32, i32, i32
  }
  func.func @transform_7(%arg0: i32, %arg1: i32) -> (i32, i32, i32) {
    %c0_i32 = arith.constant 0 : i32
    %c0_i32_0 = arith.constant 0 : i32
    %c0_i32_1 = arith.constant 0 : i32
    return %arg1, %c0_i32, %c0_i32_0 : i32, i32, i32
  }
  func.func @transform_8(%arg0: i32, %arg1: i32) -> (i32, i32) {
    %c0_i32 = arith.constant 0 : i32
    %c0_i32_0 = arith.constant 0 : i32
    %c0_i32_1 = arith.constant 0 : i32
    return %c0_i32, %c0_i32_0 : i32, i32
  }
  func.func @transform_9(%arg0: i32, %arg1: i32) -> (i32, i32, i32) {
    %c0_i32 = arith.constant 0 : i32
    %c0_i32_0 = arith.constant 0 : i32
    %c0_i32_1 = arith.constant 0 : i32
    return %arg0, %c0_i32, %c0_i32_0 : i32, i32, i32
  }
}

</mosaic_0001>

<llo_original>
// kernel: tpu_custom_call.1
$region0: #{tpu_custom_call.1}
  #allocation0 [shape = 'u32[]', space=smem, size = 0x4, offset = 0x4, fixed_abs, tag = 'smem constant byte address 0x4 - core index']
  #allocation1 [shape = 'u32[144,128]{1,0:T(1,128)}', space=vmem, size = 0x12000, scoped, tag = 'internal scratch']
  #allocation2 [shape = 'f32[8,32]{1,0:T(8,128)}', space=vmem, size = 0x1000, scoped, tag = 'scratch operand']
  %s0 = inlined_call_operand.vmem [shape: f32[2,8,32], index: 0, kind: input, shape index: {}]
  %s1 = inlined_call_operand.vmem [shape: f32[2,1,8], index: 1, kind: input, shape index: {}]
  %s2 = inlined_call_operand.vmem [shape: f32[2,4,32], index: 2, kind: input, shape index: {}]
  %s3 = inlined_call_operand.vmem [shape: bf16[2,32,96], index: 3, kind: input, shape index: {}]
  %s4 = inlined_call_operand.vmem [shape: bf16[2,32,32], index: 4, kind: input, shape index: {}]
  %s5 = inlined_call_operand.vmem [shape: bf16[2,32,128], index: 5, kind: input, shape index: {}]
  %s6 = inlined_call_operand.vmem [shape: bf16[2,128,32], index: 6, kind: input, shape index: {}]
  %s7 = inlined_call_operand.vmem [shape: f32[2,4,128], index: 7, kind: input, shape index: {}]
  %s8 = inlined_call_operand.vmem [shape: f32[2,32], index: 8, kind: input, shape index: {}]
  %s9 = inlined_call_operand.hbm [shape: f32[2,8,32], index: 9, kind: output, shape index: {}]
  %s10 = sld [smem:[#allocation0]]
  $region77: #{tpu_custom_call.1} parent=0
    _
  %s12 = ssub.s32 1, %s10
  %s13 = scalar_select 0, %s12, %s10
  $region1: #{tpu_custom_call.1} parent=0
    #allocation3 [shape = 'u8[8192]{0}', space=vmem, size = 0x2000, scoped, tag = 'output window, operand 0']
    #allocation4 [shape = 's32[2]{0}', space=sflag, size = 0x8, scoped, tag = 'scoped memory for tpu_custom_call.1']
    %14 = vsyncpa [#allocation4], 0
    %s15 = scalar_lea.sflag [#allocation4], 1
    %16 = vsyncpa %s15, 0
    loop: start=0, step=1, limit=6
    $region2: #{tpu_custom_call.1} parent=1 // loop_pre_header
      _
    $region3: #{tpu_custom_call.1} parent=1 // loop_header
      %s18 = sphi 0, %s22
      %p19 = scmp.ge.s32.totalorder %s18, 6
      %s25 = sphi 0, %s37
      %s26 = sphi 0, %s33
      %s27 = sphi 0, %s25
      %s28 = sphi 0, %s26
      %s29 = sphi 0, %s27
      %s30 = sphi 0, %s28
      %s40 = sphi 0, %s42
      %s43 = sphi 0, %s40
      %s44 = sphi 0, %s43
      %s60 = sphi 0, %s44
      %s66 = sphi 0, %s68
      %s69 = sphi 0, %s66
      %s70 = sphi 0, %s69
      %s86 = sphi 0, %s70
      %s92 = sphi 0, %s94
      %s95 = sphi 0, %s92
      %s96 = sphi 0, %s95
      %s112 = sphi 0, %s96
      %s118 = sphi 0, %s120
      %s121 = sphi 0, %s118
      %s122 = sphi 0, %s121
      %s138 = sphi 0, %s122
      %s144 = sphi 0, %s146
      %s147 = sphi 0, %s144
      %s148 = sphi 0, %s147
      %s164 = sphi 0, %s148
      %s170 = sphi 0, %s172
      %s173 = sphi 0, %s170
      %s174 = sphi 0, %s173
      %s190 = sphi 0, %s174
      %s196 = sphi 0, %s198
      %s199 = sphi 0, %s196
      %s200 = sphi 0, %s199
      %s216 = sphi 0, %s200
      %s222 = sphi 0, %s224
      %s225 = sphi 0, %s222
      %s226 = sphi 0, %s225
      %s242 = sphi 0, %s226
      %s246 = sphi 0, %s246
      %s248 = sphi 0, %s246
      %s249 = sphi 0, %s248
      %s263 = sphi 0, %s249
      %s269 = sphi 0, %s271
      %s272 = sphi 0, %s269
      %s273 = sphi 0, %s272
      %s289 = sphi 0, %s273
    $region4: #{tpu_custom_call.1} parent=1 // loop_header_branch
      %21 = sbr.rel (%p19) target = $region8
    $region5: #{tpu_custom_call.1} parent=1 // loop_body
      %s23 = ssub.s32 %s18, 1
      %s24 = ssub.s32 %s18, 2
      %s31 = sadd.s32 1, %s26
      %p32 = scmp.ge.s32.totalorder %s31, 2
      %s33 = scalar_select %p32, 0, %s31
      %s34 = sadd.s32 1, %s25
      %s35 = scalar_select %p32, %s34, %s25
      %p36 = scmp.ge.s32.totalorder %s35, 2
      %s37 = scalar_select %p36, 0, %s35
      %s38 = ssub.s32 %s25, %s37
      %p39 = scmp.eq.s32.totalorder %s38, 0
      %s41 = sadd.s32 %s40, 1
      %s42 = scalar_select %p39, %s40, %s41
      %p45 = pneg %p39
      %p46 = scmp.eq.s32.totalorder %s18, 3
      %p47 = por %p45, %p46
      %p48 = scmp.ne.s32.totalorder %s40, %s43
      %p49 = scmp.eq.s32.totalorder %s18, 0
      %p50 = por %p48, %p49
      %p51 = scmp.ne.s32.totalorder %s40, %s43
      %p52 = scmp.eq.s32.totalorder %s23, 3
      %p53 = por %p51, %p52
      %p54 = scmp.ne.s32.totalorder %s43, %s44
      %p55 = scmp.eq.s32.totalorder %s23, 0
      %p56 = por %p54, %p55
      %p57 = scmp.ne.s32.totalorder %s43, %s44
      %p58 = scmp.eq.s32.totalorder %s24, 3
      %p59 = por %p57, %p58
      %p61 = scmp.ne.s32.totalorder %s44, %s60
      %p62 = scmp.eq.s32.totalorder %s24, 0
      %p63 = por %p61, %p62
      %s64 = ssub.s32 %s25, %s37
      %p65 = scmp.eq.s32.totalorder %s64, 0
      %s67 = sadd.s32 %s66, 1
      %s68 = scalar_select %p65, %s66, %s67
      %p71 = pneg %p65
      %p72 = scmp.eq.s32.totalorder %s18, 3
      %p73 = por %p71, %p72
      %p74 = scmp.ne.s32.totalorder %s66, %s69
      %p75 = scmp.eq.s32.totalorder %s18, 0
      %p76 = por %p74, %p75
      %p77 = scmp.ne.s32.totalorder %s66, %s69
      %p78 = scmp.eq.s32.totalorder %s23, 3
      %p79 = por %p77, %p78
      %p80 = scmp.ne.s32.totalorder %s69, %s70
      %p81 = scmp.eq.s32.totalorder %s23, 0
      %p82 = por %p80, %p81
      %p83 = scmp.ne.s32.totalorder %s69, %s70
      %p84 = scmp.eq.s32.totalorder %s24, 3
      %p85 = por %p83, %p84
      %p87 = scmp.ne.s32.totalorder %s70, %s86
      %p88 = scmp.eq.s32.totalorder %s24, 0
      %p89 = por %p87, %p88
      %s90 = ssub.s32 %s26, %s33
      %p91 = scmp.eq.s32.totalorder %s90, 0
      %s93 = sadd.s32 %s92, 1
      %s94 = scalar_select %p91, %s92, %s93
      %p97 = pneg %p91
      %p98 = scmp.eq.s32.totalorder %s18, 3
      %p99 = por %p97, %p98
      %p100 = scmp.ne.s32.totalorder %s92, %s95
      %p101 = scmp.eq.s32.totalorder %s18, 0
      %p102 = por %p100, %p101
      %p103 = scmp.ne.s32.totalorder %s92, %s95
      %p104 = scmp.eq.s32.totalorder %s23, 3
      %p105 = por %p103, %p104
      %p106 = scmp.ne.s32.totalorder %s95, %s96
      %p107 = scmp.eq.s32.totalorder %s23, 0
      %p108 = por %p106, %p107
      %p109 = scmp.ne.s32.totalorder %s95, %s96
      %p110 = scmp.eq.s32.totalorder %s24, 3
      %p111 = por %p109, %p110
      %p113 = scmp.ne.s32.totalorder %s96, %s112
      %p114 = scmp.eq.s32.totalorder %s24, 0
      %p115 = por %p113, %p114
      %s116 = ssub.s32 %s26, %s33
      %p117 = scmp.eq.s32.totalorder %s116, 0
      %s119 = sadd.s32 %s118, 1
      %s120 = scalar_select %p117, %s118, %s119
      %p123 = pneg %p117
      %p124 = scmp.eq.s32.totalorder %s18, 3
      %p125 = por %p123, %p124
      %p126 = scmp.ne.s32.totalorder %s118, %s121
      %p127 = scmp.eq.s32.totalorder %s18, 0
      %p128 = por %p126, %p127
      %p129 = scmp.ne.s32.totalorder %s118, %s121
      %p130 = scmp.eq.s32.totalorder %s23, 3
      %p131 = por %p129, %p130
      %p132 = scmp.ne.s32.totalorder %s121, %s122
      %p133 = scmp.eq.s32.totalorder %s23, 0
      %p134 = por %p132, %p133
      %p135 = scmp.ne.s32.totalorder %s121, %s122
      %p136 = scmp.eq.s32.totalorder %s24, 3
      %p137 = por %p135, %p136
      %p139 = scmp.ne.s32.totalorder %s122, %s138
      %p140 = scmp.eq.s32.totalorder %s24, 0
      %p141 = por %p139, %p140
      %s142 = ssub.s32 %s26, %s33
      %p143 = scmp.eq.s32.totalorder %s142, 0
      %s145 = sadd.s32 %s144, 1
      %s146 = scalar_select %p143, %s144, %s145
      %p149 = pneg %p143
      %p150 = scmp.eq.s32.totalorder %s18, 3
      %p151 = por %p149, %p150
      %p152 = scmp.ne.s32.totalorder %s144, %s147
      %p153 = scmp.eq.s32.totalorder %s18, 0
      %p154 = por %p152, %p153
      %p155 = scmp.ne.s32.totalorder %s144, %s147
      %p156 = scmp.eq.s32.totalorder %s23, 3
      %p157 = por %p155, %p156
      %p158 = scmp.ne.s32.totalorder %s147, %s148
      %p159 = scmp.eq.s32.totalorder %s23, 0
      %p160 = por %p158, %p159
      %p161 = scmp.ne.s32.totalorder %s147, %s148
      %p162 = scmp.eq.s32.totalorder %s24, 3
      %p163 = por %p161, %p162
      %p165 = scmp.ne.s32.totalorder %s148, %s164
      %p166 = scmp.eq.s32.totalorder %s24, 0
      %p167 = por %p165, %p166
      %s168 = ssub.s32 %s26, %s33
      %p169 = scmp.eq.s32.totalorder %s168, 0
      %s171 = sadd.s32 %s170, 1
      %s172 = scalar_select %p169, %s170, %s171
      %p175 = pneg %p169
      %p176 = scmp.eq.s32.totalorder %s18, 3
      %p177 = por %p175, %p176
      %p178 = scmp.ne.s32.totalorder %s170, %s173
      %p179 = scmp.eq.s32.totalorder %s18, 0
      %p180 = por %p178, %p179
      %p181 = scmp.ne.s32.totalorder %s170, %s173
      %p182 = scmp.eq.s32.totalorder %s23, 3
      %p183 = por %p181, %p182
      %p184 = scmp.ne.s32.totalorder %s173, %s174
      %p185 = scmp.eq.s32.totalorder %s23, 0
      %p186 = por %p184, %p185
      %p187 = scmp.ne.s32.totalorder %s173, %s174
      %p188 = scmp.eq.s32.totalorder %s24, 3
      %p189 = por %p187, %p188
      %p191 = scmp.ne.s32.totalorder %s174, %s190
      %p192 = scmp.eq.s32.totalorder %s24, 0
      %p193 = por %p191, %p192
      %s194 = ssub.s32 %s26, %s33
      %p195 = scmp.eq.s32.totalorder %s194, 0
      %s197 = sadd.s32 %s196, 1
      %s198 = scalar_select %p195, %s196, %s197
      %p201 = pneg %p195
      %p202 = scmp.eq.s32.totalorder %s18, 3
      %p203 = por %p201, %p202
      %p204 = scmp.ne.s32.totalorder %s196, %s199
      %p205 = scmp.eq.s32.totalorder %s18, 0
      %p206 = por %p204, %p205
      %p207 = scmp.ne.s32.totalorder %s196, %s199
      %p208 = scmp.eq.s32.totalorder %s23, 3
      %p209 = por %p207, %p208
      %p210 = scmp.ne.s32.totalorder %s199, %s200
      %p211 = scmp.eq.s32.totalorder %s23, 0
      %p212 = por %p210, %p211
      %p213 = scmp.ne.s32.totalorder %s199, %s200
      %p214 = scmp.eq.s32.totalorder %s24, 3
      %p215 = por %p213, %p214
      %p217 = scmp.ne.s32.totalorder %s200, %s216
      %p218 = scmp.eq.s32.totalorder %s24, 0
      %p219 = por %p217, %p218
      %s220 = ssub.s32 %s26, %s33
      %p221 = scmp.eq.s32.totalorder %s220, 0
      %s223 = sadd.s32 %s222, 1
      %s224 = scalar_select %p221, %s222, %s223
      %p227 = pneg %p221
      %p228 = scmp.eq.s32.totalorder %s18, 3
      %p229 = por %p227, %p228
      %p230 = scmp.ne.s32.totalorder %s222, %s225
      %p231 = scmp.eq.s32.totalorder %s18, 0
      %p232 = por %p230, %p231
      %p233 = scmp.ne.s32.totalorder %s222, %s225
      %p234 = scmp.eq.s32.totalorder %s23, 3
      %p235 = por %p233, %p234
      %p236 = scmp.ne.s32.totalorder %s225, %s226
      %p237 = scmp.eq.s32.totalorder %s23, 0
      %p238 = por %p236, %p237
      %p239 = scmp.ne.s32.totalorder %s225, %s226
      %p240 = scmp.eq.s32.totalorder %s24, 3
      %p241 = por %p239, %p240
      %p243 = scmp.ne.s32.totalorder %s226, %s242
      %p244 = scmp.eq.s32.totalorder %s24, 0
      %p245 = por %p243, %p244
      %s247 = sadd.s32 %s246, 1
      %p250 = scmp.eq.s32.totalorder %s18, 3
      %p251 = scmp.ne.s32.totalorder %s246, %s248
      %p252 = scmp.eq.s32.totalorder %s18, 0
      %p253 = por %p251, %p252
      %p254 = scmp.ne.s32.totalorder %s246, %s248
      %p255 = scmp.eq.s32.totalorder %s23, 3
      %p256 = por %p254, %p255
      %p257 = scmp.ne.s32.totalorder %s248, %s249
      %p258 = scmp.eq.s32.totalorder %s23, 0
      %p259 = por %p257, %p258
      %p260 = scmp.ne.s32.totalorder %s248, %s249
      %p261 = scmp.eq.s32.totalorder %s24, 3
      %p262 = por %p260, %p261
      %p264 = scmp.ne.s32.totalorder %s249, %s263
      %p265 = scmp.eq.s32.totalorder %s24, 0
      %p266 = por %p264, %p265
      %s267 = ssub.s32 %s25, %s37
      %p268 = scmp.eq.s32.totalorder %s267, 0
      %s270 = sadd.s32 %s269, 1
      %s271 = scalar_select %p268, %s269, %s270
      %p274 = pneg %p268
      %p275 = scmp.eq.s32.totalorder %s18, 3
      %p276 = por %p274, %p275
      %p277 = scmp.ne.s32.totalorder %s269, %s272
      %p278 = scmp.eq.s32.totalorder %s18, 0
      %p279 = por %p277, %p278
      %p280 = scmp.ne.s32.totalorder %s269, %s272
      %p281 = scmp.eq.s32.totalorder %s23, 3
      %p282 = por %p280, %p281
      %p283 = scmp.ne.s32.totalorder %s272, %s273
      %p284 = scmp.eq.s32.totalorder %s23, 0
      %p285 = por %p283, %p284
      %p286 = scmp.ne.s32.totalorder %s272, %s273
      %p287 = scmp.eq.s32.totalorder %s24, 3
      %p288 = por %p286, %p287
      %p290 = scmp.ne.s32.totalorder %s273, %s289
      %p291 = scmp.eq.s32.totalorder %s24, 0
      %p292 = por %p290, %p291
      %p293 = scmp.le.s32.totalorder 1, %s18
      %p294 = scmp.lt.s32.totalorder %s18, 5
      %p295 = pnand %p293, %p294
      %p296 = pneg %p295
      // Predicated region
      $region9: #{tpu_custom_call.1} parent=5 // pred_check
        _
      $region10: #{tpu_custom_call.1} parent=5 // pred_check_branch
        %298 = sbr.rel (%p295) target = $region12
      $region11: #{tpu_custom_call.1} parent=5 // pred_region
        %s299 = ssub.s32 %s18, 1
        // Predicated region
        $region13: #{tpu_custom_call.1} parent=11 // pred_check
          %p300 = pneg %p259
        $region14: #{tpu_custom_call.1} parent=11 // pred_check_branch
          %302 = sbr.rel (%p300) target = $region16
        $region15: #{tpu_custom_call.1} parent=11 // pred_region
          _
        $region16: #{tpu_custom_call.1} parent=11 // pred_fallthru
          _
      $region12: #{tpu_custom_call.1} parent=5 // pred_fallthru
        _
      %p303 = scmp.lt.s32.totalorder %s18, 4
      // Predicated region
      $region17: #{tpu_custom_call.1} parent=5 // pred_check
        %p304 = pneg %p303
      $region18: #{tpu_custom_call.1} parent=5 // pred_check_branch
        %306 = sbr.rel (%p304) target = $region20
      $region19: #{tpu_custom_call.1} parent=5 // pred_region
        // Predicated region
        $region21: #{tpu_custom_call.1} parent=19 // pred_check
          %p307 = pneg %p50
        $region22: #{tpu_custom_call.1} parent=19 // pred_check_branch
          %309 = sbr.rel (%p307) target = $region24
        $region23: #{tpu_custom_call.1} parent=19 // pred_region
          %p310 = scmp.lt.s32.totalorder %s25, 1
          %s311 = scalar_select %p310, %s25, 1
          %s312 = smul.addr %s311, 8
          %s313 = scalar_lea.vmem %s0, %s312
        $region24: #{tpu_custom_call.1} parent=19 // pred_fallthru
          _
        // Predicated region
        $region25: #{tpu_custom_call.1} parent=19 // pred_check
          %p314 = pneg %p76
        $region26: #{tpu_custom_call.1} parent=19 // pred_check_branch
          %316 = sbr.rel (%p314) target = $region28
        $region27: #{tpu_custom_call.1} parent=19 // pred_region
          %p317 = scmp.lt.s32.totalorder %s25, 1
          %s318 = scalar_select %p317, %s25, 1
          %s319 = scalar_lea.vmem %s1, %s318
        $region28: #{tpu_custom_call.1} parent=19 // pred_fallthru
          _
        // Predicated region
        $region29: #{tpu_custom_call.1} parent=19 // pred_check
          %p320 = pneg %p102
        $region30: #{tpu_custom_call.1} parent=19 // pred_check_branch
          %322 = sbr.rel (%p320) target = $region32
        $region31: #{tpu_custom_call.1} parent=19 // pred_region
          %p323 = scmp.lt.s32.totalorder %s26, 1
          %s324 = scalar_select %p323, %s26, 1
          %s325 = smul.addr %s324, 4
          %s326 = scalar_lea.vmem %s2, %s325
        $region32: #{tpu_custom_call.1} parent=19 // pred_fallthru
          _
        // Predicated region
        $region33: #{tpu_custom_call.1} parent=19 // pred_check
          %p327 = pneg %p128
        $region34: #{tpu_custom_call.1} parent=19 // pred_check_branch
          %329 = sbr.rel (%p327) target = $region36
        $region35: #{tpu_custom_call.1} parent=19 // pred_region
          %p330 = scmp.lt.s32.totalorder %s26, 1
          %s331 = scalar_select %p330, %s26, 1
          %s332 = smul.addr %s331, 4
          %s333 = smul.addr %s332, 4
          %s334 = scalar_lea.vmem %s3, %s333
        $region36: #{tpu_custom_call.1} parent=19 // pred_fallthru
          _
        // Predicated region
        $region37: #{tpu_custom_call.1} parent=19 // pred_check
          %p335 = pneg %p154
        $region38: #{tpu_custom_call.1} parent=19 // pred_check_branch
          %337 = sbr.rel (%p335) target = $region40
        $region39: #{tpu_custom_call.1} parent=19 // pred_region
          %p338 = scmp.lt.s32.totalorder %s26, 1
          %s339 = scalar_select %p338, %s26, 1
          %s340 = smul.addr %s339, 4
          %s341 = smul.addr %s340, 4
          %s342 = scalar_lea.vmem %s4, %s341
        $region40: #{tpu_custom_call.1} parent=19 // pred_fallthru
          _
        // Predicated region
        $region41: #{tpu_custom_call.1} parent=19 // pred_check
          %p343 = pneg %p180
        $region42: #{tpu_custom_call.1} parent=19 // pred_check_branch
          %345 = sbr.rel (%p343) target = $region44
        $region43: #{tpu_custom_call.1} parent=19 // pred_region
          %p346 = scmp.lt.s32.totalorder %s26, 1
          %s347 = scalar_select %p346, %s26, 1
          %s348 = smul.addr %s347, 4
          %s349 = smul.addr %s348, 4
          %s350 = scalar_lea.vmem %s5, %s349
        $region44: #{tpu_custom_call.1} parent=19 // pred_fallthru
          _
        // Predicated region
        $region45: #{tpu_custom_call.1} parent=19 // pred_check
          %p351 = pneg %p206
        $region46: #{tpu_custom_call.1} parent=19 // pred_check_branch
          %353 = sbr.rel (%p351) target = $region48
        $region47: #{tpu_custom_call.1} parent=19 // pred_region
          %p354 = scmp.lt.s32.totalorder %s26, 1
          %s355 = scalar_select %p354, %s26, 1
          %s356 = smul.addr %s355, 16
          %s357 = smul.addr %s356, 4
          %s358 = scalar_lea.vmem %s6, %s357
        $region48: #{tpu_custom_call.1} parent=19 // pred_fallthru
          _
        // Predicated region
        $region49: #{tpu_custom_call.1} parent=19 // pred_check
          %p359 = pneg %p232
        $region50: #{tpu_custom_call.1} parent=19 // pred_check_branch
          %361 = sbr.rel (%p359) target = $region52
        $region51: #{tpu_custom_call.1} parent=19 // pred_region
          %p362 = scmp.lt.s32.totalorder %s26, 1
          %s363 = scalar_select %p362, %s26, 1
          %s364 = smul.addr %s363, 4
          %s365 = scalar_lea.vmem %s7, %s364
        $region52: #{tpu_custom_call.1} parent=19 // pred_fallthru
          _
      $region20: #{tpu_custom_call.1} parent=5 // pred_fallthru
        _
      %p366 = scmp.le.s32.totalorder 1, %s18
      %p367 = scmp.lt.s32.totalorder %s18, 5
      %p368 = pnand %p366, %p367
      %p369 = pneg %p368
      // Predicated region
      $region53: #{tpu_custom_call.1} parent=5 // pred_check
        _
      $region54: #{tpu_custom_call.1} parent=5 // pred_check_branch
        %371 = sbr.rel (%p368) target = $region56
      $region55: #{tpu_custom_call.1} parent=5 // pred_region
        %s372 = ssub.s32 %s18, 1
        %p373 = scmp.lt.s32.totalorder %s27, 1
        %s374 = scalar_select %p373, %s27, 1
        %s375 = smul.addr %s374, 8
        %s376 = scalar_lea.vmem %s0, %s375
        %p377 = pneg %p56
        %p378 = pneg %p53
        %p379 = scmp.lt.s32.totalorder %s27, 1
        %s380 = scalar_select %p379, %s27, 1
        %s381 = scalar_lea.vmem %s1, %s380
        %p382 = pneg %p82
        %p383 = pneg %p79
        %p384 = scmp.lt.s32.totalorder %s28, 1
        %s385 = scalar_select %p384, %s28, 1
        %s386 = smul.addr %s385, 4
        %s387 = scalar_lea.vmem %s2, %s386
        %p388 = pneg %p108
        %p389 = pneg %p105
        %p390 = scmp.lt.s32.totalorder %s28, 1
        %s391 = scalar_select %p390, %s28, 1
        %s392 = smul.addr %s391, 4
        %s393 = smul.addr %s392, 4
        %s394 = scalar_lea.vmem %s3, %s393
        %p395 = pneg %p134
        %p396 = pneg %p131
        %p397 = scmp.lt.s32.totalorder %s28, 1
        %s398 = scalar_select %p397, %s28, 1
        %s399 = smul.addr %s398, 4
        %s400 = smul.addr %s399, 4
        %s401 = scalar_lea.vmem %s4, %s400
        %p402 = pneg %p160
        %p403 = pneg %p157
        %p404 = scmp.lt.s32.totalorder %s28, 1
        %s405 = scalar_select %p404, %s28, 1
        %s406 = smul.addr %s405, 4
        %s407 = smul.addr %s406, 4
        %s408 = scalar_lea.vmem %s5, %s407
        %p409 = pneg %p186
        %p410 = pneg %p183
        %p411 = scmp.lt.s32.totalorder %s28, 1
        %s412 = scalar_select %p411, %s28, 1
        %s413 = smul.addr %s412, 16
        %s414 = smul.addr %s413, 4
        %s415 = scalar_lea.vmem %s6, %s414
        %p416 = pneg %p212
        %p417 = pneg %p209
        %p418 = scmp.lt.s32.totalorder %s28, 1
        %s419 = scalar_select %p418, %s28, 1
        %s420 = smul.addr %s419, 4
        %s421 = scalar_lea.vmem %s7, %s420
        %p422 = pneg %p238
        %p423 = pneg %p235
        %p424 = pneg %p259
        %p425 = pneg %p256
        %p426 = pneg %p285
        %p427 = pneg %p282
        %s428 = sand.u32 %s272, 1
        %s429 = scalar_lea.sflag [#allocation4], %s428
        %s430 = sand.u32 %s272, 1
        %s431 = smul.addr %s430, 8
        %s432 = scalar_lea.vmem [#allocation3], %s431
        %p433 = scmp.lt.s32.totalorder %s27, 1
        %s434 = scalar_select %p433, %s27, 1
        %s435 = smul.addr %s434, 8
        %s436 = scalar_lea.vmem %s0, %s435
        %p437 = scmp.lt.s32.totalorder %s27, 1
        %s438 = scalar_select %p437, %s27, 1
        %s439 = scalar_lea.vmem %s1, %s438
        %p440 = scmp.lt.s32.totalorder %s28, 1
        %s441 = scalar_select %p440, %s28, 1
        %s442 = smul.addr %s441, 4
        %s443 = scalar_lea.vmem %s2, %s442
        %p444 = scmp.lt.s32.totalorder %s28, 1
        %s445 = scalar_select %p444, %s28, 1
        %s446 = smul.addr %s445, 4
        %s447 = smul.addr %s446, 4
        %s448 = scalar_lea.vmem %s3, %s447
        %p449 = scmp.lt.s32.totalorder %s28, 1
        %s450 = scalar_select %p449, %s28, 1
        %s451 = smul.addr %s450, 4
        %s452 = smul.addr %s451, 4
        %s453 = scalar_lea.vmem %s4, %s452
        %p454 = scmp.lt.s32.totalorder %s28, 1
        %s455 = scalar_select %p454, %s28, 1
        %s456 = smul.addr %s455, 4
        %s457 = smul.addr %s456, 4
        %s458 = scalar_lea.vmem %s5, %s457
        %p459 = scmp.lt.s32.totalorder %s28, 1
        %s460 = scalar_select %p459, %s28, 1
        %s461 = smul.addr %s460, 16
        %s462 = smul.addr %s461, 4
        %s463 = scalar_lea.vmem %s6, %s462
        %p464 = scmp.lt.s32.totalorder %s28, 1
        %s465 = scalar_select %p464, %s28, 1
        %s466 = smul.addr %s465, 4
        %s467 = scalar_lea.vmem %s7, %s466
        %p469 = scmp.eq.s32.totalorder %s28, 0
        // Predicated region
        $region57: #{tpu_custom_call.1} parent=55 // pred_check
          %p470 = pneg %p469
        $region58: #{tpu_custom_call.1} parent=55 // pred_check_branch
          %472 = sbr.rel (%p470) target = $region60
        $region59: #{tpu_custom_call.1} parent=55 // pred_region
          %v473 = vld [vmem:[%s436] sm:$0xff]
          %vm474 = vcmask 261120
          %475 = vst.msk [vmem:[#allocation2] sm:$0xff] %vm474, %v473
        $region60: #{tpu_custom_call.1} parent=55 // pred_fallthru
          _
        %v476 = vld [vmem:[#allocation2] sm:$0xff]
        %v477 = vld [vmem:[%s443] sm:$0xf]
        %v478 = vld [vmem:[%s467] sm:$0xf]
        %v479 = vld [vmem:[%s439] sm:$0x1]
        %vm480 = vcmp.eq.f32.partialorder %v479, 0.0
        %v481 = vsel %vm480, -1e+09, 0.0
        %vm482 = vcmask 261120
        %v483 = vsel %vm482, %v476, 0.0
        %484 = vadd.xlane.f32.xlu0 %v483
        %v485 = vpop.xlane.xlu0 %484
        %v486 = vrcp.pop 32.0
        %v487 = vmul.f32 %v485, %v486
        %v488 = vsub.f32 %v476, %v487
        %v489 = vmul.f32 %v488, %v488
        %v490 = vsel %vm482, %v489, 0.0
        %491 = vadd.xlane.f32.xlu0 %v490
        %v492 = vpop.xlane.xlu0 %491
        %v493 = vmul.f32 %v492, %v486
        %v494 = vadd.f32 %v493, 1e-06
        %v495 = vrsqrt.pop %v494
        %v496 = vmul.f32 %v488, %v495
        %v497 = vlaneseq
        %v498 = vshrl.u32 %v497, 7
        %v499 = vsub.s32 0, %v498
        %v500 = vrot.slane %v477, %v499
        %v501 = vmul.f32 %v496, %v500
        %v502 = vlaneseq
        %v503 = vshrl.u32 %v502, 7
        %v504 = vsub.s32 1, %v503
        %v505 = vrot.slane %v477, %v504
        %v506 = vadd.f32 %v501, %v505
        %v507 = vpack.c.bf16 %v506, %v506
        %v508 = vld [vmem:[%s448] sm:$0xf]
        %v509 = vld [vmem:[%s448 + $0x4] sm:$0xf]
        %v510 = vld [vmem:[%s448 + $0x8] sm:$0xf]
        %v511 = vld [vmem:[%s448 + $0xc] sm:$0xf]
        %v512 = vlaneseq
        %v513 = vshrl.u32 %v512, 7
        %v514 = vsub.s32 0, %v513
        %v515 = vrot.slane %v478, %v514
        %v520 = vunpack.c.l.b16 %v508
        %v521 = vunpack.c.l.b16 %v509
        %v522 = vunpack.c.l.b16 %v510
        %v523 = vunpack.c.l.b16 %v511
        %v524 = vpack.c.b16 %v521, %v520
        %v525 = vpack.c.b16 %v523, %v522
        %v529 = vsel %vm482, %v507, 0
        %531 = vmatprep.subr.bf16.mxu0 0
        %532 = vmatpush1.bf16.msra.mxu0 0
        %533 = vmatprep.subr.bf16.mxu0 0
        %534 = vmatpush1.bf16.msra.mxu0 0
        %535 = vmatprep.subr.bf16.mxu0 0
        %536 = vmatpush1.bf16.msra.mxu0 0
        %537 = vmatprep.subr.bf16.mxu0 0
        %538 = vmatpush1.bf16.msra.mxu0 0
        %539 = vmatprep.subr.bf16.mxu0 0
        %540 = vmatpush1.bf16.msra.mxu0 0
        %541 = vmatprep.subr.bf16.mxu0 0
        %542 = vmatpush1.bf16.msra.mxu0 0
        %543 = vmatprep.subr.bf16.mxu0 0
        %544 = vmatpush1.bf16.msra.mxu0 %v525
        %545 = vmatprep.subr.bf16.mxu0 0
        %546 = vmatpush1.bf16.msra.mxu0 %v524
        %547 = vmatprep.subr.bf16.mxu0 0
        %548 = vmatpush2.bf16.msra.mxu0 0
        %549 = vmatprep.subr.bf16.mxu0 0
        %550 = vmatpush2.bf16.msra.mxu0 0
        %551 = vmatprep.subr.bf16.mxu0 0
        %552 = vmatpush2.bf16.msra.mxu0 0
        %553 = vmatprep.subr.bf16.mxu0 0
        %554 = vmatpush2.bf16.msra.mxu0 0
        %555 = vmatprep.subr.bf16.mxu0 0
        %556 = vmatpush2.bf16.msra.mxu0 0
        %557 = vmatprep.subr.bf16.mxu0 0
        %558 = vmatpush2.bf16.msra.mxu0 0
        %559 = vmatprep.subr.bf16.mxu0 0
        %560 = vmatpush2.bf16.msra.mxu0 0
        %561 = vmatprep.subr.bf16.mxu0 0
        %562 = vmatpush2.bf16.msra.mxu0 0
        %563 = vmatprep.mubr.bf16.mxu0 0
        %564 = vmatmul.mubr.bf16.gmra.mxu0 %v529
        %v565 = vpop.f32.mrf.mxu0
        %v566 = vadd.f32 %v515, %v565
        %v567 = vpop.f32.mrf.mxu0
        %v568 = vpop.f32.mrf.mxu0
        %v569 = vpop.f32.mrf.mxu0
        %570 = vdwg.mxu0
        %v571 = vmul.f32 %v566, 0.35355338
        %573 = vrot.lane.b32.xlu0 %v571, 120
        %v574 = vpop.permute.xlu0 %573
        %576 = vrot.lane.b32.xlu0 %v571, 112
        %v577 = vpop.permute.xlu0 %576
        %579 = vrot.lane.b32.xlu0 %v571, 104
        %v580 = vpop.permute.xlu0 %579
        %v582 = vcombine.low %v571, %v577
        %v583 = vcombine.high %v571, %v577
        %v585 = vunpack.c.l.s4 1983009808
        %v586 = vunpack.c.0.s8 %v585
        %v587 = vlaneseq
        %v588 = vshrl.u32 %v587, 7
        %v589 = vsub.s32 %v586, %v588
        %v590 = vrot.slane %v582, %v589
        %v592 = vunpack.c.l.s4 1983009808
        %v593 = vunpack.c.0.s8 %v592
        %v594 = vlaneseq
        %v595 = vshrl.u32 %v594, 7
        %v596 = vsub.s32 %v593, %v595
        %v597 = vrot.slane %v583, %v596
        %v598 = vcombine.low %v574, %v580
        %v599 = vcombine.high %v574, %v580
        %v601 = vunpack.c.l.s4 1983009808
        %v602 = vunpack.c.0.s8 %v601
        %v603 = vlaneseq
        %v604 = vshrl.u32 %v603, 7
        %v605 = vsub.s32 %v602, %v604
        %v606 = vrot.slane %v598, %v605
        %v608 = vunpack.c.l.s4 1983009808
        %v609 = vunpack.c.0.s8 %v608
        %v610 = vlaneseq
        %v611 = vshrl.u32 %v610, 7
        %v612 = vsub.s32 %v609, %v611
        %v613 = vrot.slane %v599, %v612
        %v614 = vcombine.low %v590, %v606
        %v615 = vcombine.high %v590, %v606
        %v617 = vunpack.c.l.s4 1934713408
        %v618 = vunpack.c.0.s8 %v617
        %v619 = vlaneseq
        %v620 = vshrl.u32 %v619, 7
        %v621 = vsub.s32 %v618, %v620
        %v622 = vrot.slane %v614, %v621
        %v624 = vunpack.c.l.s4 1934713408
        %v625 = vunpack.c.0.s8 %v624
        %v626 = vlaneseq
        %v627 = vshrl.u32 %v626, 7
        %v628 = vsub.s32 %v625, %v627
        %v629 = vrot.slane %v615, %v628
        %v630 = vcombine.low %v597, %v613
        %v631 = vcombine.high %v597, %v613
        %v633 = vunpack.c.l.s4 1934713408
        %v634 = vunpack.c.0.s8 %v633
        %v635 = vlaneseq
        %v636 = vshrl.u32 %v635, 7
        %v637 = vsub.s32 %v634, %v636
        %v638 = vrot.slane %v630, %v637
        %v640 = vunpack.c.l.s4 1934713408
        %v641 = vunpack.c.0.s8 %v640
        %v642 = vlaneseq
        %v643 = vshrl.u32 %v642, 7
        %v644 = vsub.s32 %v641, %v643
        %v645 = vrot.slane %v631, %v644
        %v646 = vcombine.high %v622, 0.0
        %v647 = vcombine.high %v629, 0.0
        %v648 = vcombine.high %v638, 0.0
        %v649 = vcombine.high %v645, 0.0
        %v650 = vcombine.low %v622, %v629
        %v652 = vunpack.c.l.s4 1983009808
        %v653 = vunpack.c.0.s8 %v652
        %v654 = vlaneseq
        %v655 = vshrl.u32 %v654, 7
        %v656 = vsub.s32 %v653, %v655
        %v657 = vrot.slane %v650, %v656
        %v658 = vcombine.low %v646, %v647
        %v660 = vunpack.c.l.s4 1983009808
        %v661 = vunpack.c.0.s8 %v660
        %v662 = vlaneseq
        %v663 = vshrl.u32 %v662, 7
        %v664 = vsub.s32 %v661, %v663
        %v665 = vrot.slane %v658, %v664
        %v666 = vcombine.low %v638, %v645
        %v668 = vunpack.c.l.s4 1983009808
        %v669 = vunpack.c.0.s8 %v668
        %v670 = vlaneseq
        %v671 = vshrl.u32 %v670, 7
        %v672 = vsub.s32 %v669, %v671
        %v673 = vrot.slane %v666, %v672
        %v674 = vcombine.low %v648, %v649
        %v676 = vunpack.c.l.s4 1983009808
        %v677 = vunpack.c.0.s8 %v676
        %v678 = vlaneseq
        %v679 = vshrl.u32 %v678, 7
        %v680 = vsub.s32 %v677, %v679
        %v681 = vrot.slane %v674, %v680
        %v682 = vcombine.low %v657, %v665
        %v683 = vcombine.high %v657, %v665
        %v685 = vunpack.c.l.s4 1934713408
        %v686 = vunpack.c.0.s8 %v685
        %v687 = vlaneseq
        %v688 = vshrl.u32 %v687, 7
        %v689 = vsub.s32 %v686, %v688
        %v690 = vrot.slane %v682, %v689
        %v692 = vunpack.c.l.s4 1934713408
        %v693 = vunpack.c.0.s8 %v692
        %v694 = vlaneseq
        %v695 = vshrl.u32 %v694, 7
        %v696 = vsub.s32 %v693, %v695
        %v697 = vrot.slane %v683, %v696
        %v698 = vcombine.low %v673, %v681
        %v699 = vcombine.high %v673, %v681
        %v701 = vunpack.c.l.s4 1934713408
        %v702 = vunpack.c.0.s8 %v701
        %v703 = vlaneseq
        %v704 = vshrl.u32 %v703, 7
        %v705 = vsub.s32 %v702, %v704
        %v706 = vrot.slane %v698, %v705
        %v708 = vunpack.c.l.s4 1934713408
        %v709 = vunpack.c.0.s8 %v708
        %v710 = vlaneseq
        %v711 = vshrl.u32 %v710, 7
        %v712 = vsub.s32 %v709, %v711
        %v713 = vrot.slane %v699, %v712
        %v714 = vcombine.low %v690, %v706
        %v715 = vcombine.high %v690, %v706
        %v716 = vcombine.low %v697, %v713
        %v717 = vcombine.high %v697, %v713
        %v718 = vpack.c.bf16 %v714, %v714
        %v719 = vpack.c.bf16 %v715, %v715
        %v720 = vpack.c.bf16 %v716, %v716
        %v721 = vpack.c.bf16 %v717, %v717
        %723 = vrot.lane.b32.xlu0 %v566, 120
        %v724 = vpop.permute.xlu0 %723
        %725 = vrot.lane.b32.xlu0 %v566, 112
        %v726 = vpop.permute.xlu0 %725
        %727 = vrot.lane.b32.xlu0 %v566, 104
        %v728 = vpop.permute.xlu0 %727
        %729 = vrot.lane.b32.xlu0 %v566, 96
        %v730 = vpop.permute.xlu0 %729
        %731 = vrot.lane.b32.xlu0 %v724, 96
        %v732 = vpop.permute.xlu0 %731
        %733 = vrot.lane.b32.xlu0 %v726, 96
        %v734 = vpop.permute.xlu0 %733
        %735 = vrot.lane.b32.xlu0 %v728, 96
        %v736 = vpop.permute.xlu0 %735
        %v741 = vcombine.low %v730, %v734
        %v742 = vcombine.high %v730, %v734
        %v744 = vunpack.c.l.s4 1983009808
        %v745 = vunpack.c.0.s8 %v744
        %v746 = vlaneseq
        %v747 = vshrl.u32 %v746, 7
        %v748 = vsub.s32 %v745, %v747
        %v749 = vrot.slane %v741, %v748
        %v751 = vunpack.c.l.s4 1983009808
        %v752 = vunpack.c.0.s8 %v751
        %v753 = vlaneseq
        %v754 = vshrl.u32 %v753, 7
        %v755 = vsub.s32 %v752, %v754
        %v756 = vrot.slane %v742, %v755
        %v757 = vcombine.low %v732, %v736
        %v758 = vcombine.high %v732, %v736
        %v760 = vunpack.c.l.s4 1983009808
        %v761 = vunpack.c.0.s8 %v760
        %v762 = vlaneseq
        %v763 = vshrl.u32 %v762, 7
        %v764 = vsub.s32 %v761, %v763
        %v765 = vrot.slane %v757, %v764
        %v767 = vunpack.c.l.s4 1983009808
        %v768 = vunpack.c.0.s8 %v767
        %v769 = vlaneseq
        %v770 = vshrl.u32 %v769, 7
        %v771 = vsub.s32 %v768, %v770
        %v772 = vrot.slane %v758, %v771
        %v773 = vcombine.low %v749, %v765
        %v774 = vcombine.high %v749, %v765
        %v776 = vunpack.c.l.s4 1934713408
        %v777 = vunpack.c.0.s8 %v776
        %v778 = vlaneseq
        %v779 = vshrl.u32 %v778, 7
        %v780 = vsub.s32 %v777, %v779
        %v781 = vrot.slane %v773, %v780
        %v783 = vunpack.c.l.s4 1934713408
        %v784 = vunpack.c.0.s8 %v783
        %v785 = vlaneseq
        %v786 = vshrl.u32 %v785, 7
        %v787 = vsub.s32 %v784, %v786
        %v788 = vrot.slane %v774, %v787
        %v789 = vcombine.low %v756, %v772
        %v790 = vcombine.high %v756, %v772
        %v792 = vunpack.c.l.s4 1934713408
        %v793 = vunpack.c.0.s8 %v792
        %v794 = vlaneseq
        %v795 = vshrl.u32 %v794, 7
        %v796 = vsub.s32 %v793, %v795
        %v797 = vrot.slane %v789, %v796
        %v799 = vunpack.c.l.s4 1934713408
        %v800 = vunpack.c.0.s8 %v799
        %v801 = vlaneseq
        %v802 = vshrl.u32 %v801, 7
        %v803 = vsub.s32 %v800, %v802
        %v804 = vrot.slane %v790, %v803
        %v805 = vcombine.high %v781, 0.0
        %v806 = vcombine.high %v788, 0.0
        %v807 = vcombine.high %v797, 0.0
        %v808 = vcombine.high %v804, 0.0
        %v809 = vcombine.low %v781, %v788
        %v811 = vunpack.c.l.s4 1983009808
        %v812 = vunpack.c.0.s8 %v811
        %v813 = vlaneseq
        %v814 = vshrl.u32 %v813, 7
        %v815 = vsub.s32 %v812, %v814
        %v816 = vrot.slane %v809, %v815
        %v817 = vcombine.low %v805, %v806
        %v819 = vunpack.c.l.s4 1983009808
        %v820 = vunpack.c.0.s8 %v819
        %v821 = vlaneseq
        %v822 = vshrl.u32 %v821, 7
        %v823 = vsub.s32 %v820, %v822
        %v824 = vrot.slane %v817, %v823
        %v825 = vcombine.low %v797, %v804
        %v827 = vunpack.c.l.s4 1983009808
        %v828 = vunpack.c.0.s8 %v827
        %v829 = vlaneseq
        %v830 = vshrl.u32 %v829, 7
        %v831 = vsub.s32 %v828, %v830
        %v832 = vrot.slane %v825, %v831
        %v833 = vcombine.low %v807, %v808
        %v835 = vunpack.c.l.s4 1983009808
        %v836 = vunpack.c.0.s8 %v835
        %v837 = vlaneseq
        %v838 = vshrl.u32 %v837, 7
        %v839 = vsub.s32 %v836, %v838
        %v840 = vrot.slane %v833, %v839
        %v841 = vcombine.low %v816, %v824
        %v842 = vcombine.high %v816, %v824
        %v844 = vunpack.c.l.s4 1934713408
        %v845 = vunpack.c.0.s8 %v844
        %v846 = vlaneseq
        %v847 = vshrl.u32 %v846, 7
        %v848 = vsub.s32 %v845, %v847
        %v849 = vrot.slane %v841, %v848
        %v851 = vunpack.c.l.s4 1934713408
        %v852 = vunpack.c.0.s8 %v851
        %v853 = vlaneseq
        %v854 = vshrl.u32 %v853, 7
        %v855 = vsub.s32 %v852, %v854
        %v856 = vrot.slane %v842, %v855
        %v857 = vcombine.low %v832, %v840
        %v858 = vcombine.high %v832, %v840
        %v860 = vunpack.c.l.s4 1934713408
        %v861 = vunpack.c.0.s8 %v860
        %v862 = vlaneseq
        %v863 = vshrl.u32 %v862, 7
        %v864 = vsub.s32 %v861, %v863
        %v865 = vrot.slane %v857, %v864
        %v867 = vunpack.c.l.s4 1934713408
        %v868 = vunpack.c.0.s8 %v867
        %v869 = vlaneseq
        %v870 = vshrl.u32 %v869, 7
        %v871 = vsub.s32 %v868, %v870
        %v872 = vrot.slane %v858, %v871
        %v873 = vcombine.low %v849, %v865
        %v874 = vcombine.high %v849, %v865
        %v875 = vcombine.low %v856, %v872
        %v876 = vcombine.high %v856, %v872
        %v877 = vpack.c.bf16 %v873, %v873
        %v878 = vpack.c.bf16 %v874, %v874
        %v879 = vpack.c.bf16 %v875, %v875
        %v880 = vpack.c.bf16 %v876, %v876
        %881 = vrot.lane.b32.xlu0 %v566, 64
        %v882 = vpop.permute.xlu0 %881
        %883 = vrot.lane.b32.xlu0 %v724, 64
        %v884 = vpop.permute.xlu0 %883
        %885 = vrot.lane.b32.xlu0 %v726, 64
        %v886 = vpop.permute.xlu0 %885
        %887 = vrot.lane.b32.xlu0 %v728, 64
        %v888 = vpop.permute.xlu0 %887
        %v893 = vcombine.low %v882, %v886
        %v894 = vcombine.high %v882, %v886
        %v896 = vunpack.c.l.s4 1983009808
        %v897 = vunpack.c.0.s8 %v896
        %v898 = vlaneseq
        %v899 = vshrl.u32 %v898, 7
        %v900 = vsub.s32 %v897, %v899
        %v901 = vrot.slane %v893, %v900
        %v903 = vunpack.c.l.s4 1983009808
        %v904 = vunpack.c.0.s8 %v903
        %v905 = vlaneseq
        %v906 = vshrl.u32 %v905, 7
        %v907 = vsub.s32 %v904, %v906
        %v908 = vrot.slane %v894, %v907
        %v909 = vcombine.low %v884, %v888
        %v910 = vcombine.high %v884, %v888
        %v912 = vunpack.c.l.s4 1983009808
        %v913 = vunpack.c.0.s8 %v912
        %v914 = vlaneseq
        %v915 = vshrl.u32 %v914, 7
        %v916 = vsub.s32 %v913, %v915
        %v917 = vrot.slane %v909, %v916
        %v919 = vunpack.c.l.s4 1983009808
        %v920 = vunpack.c.0.s8 %v919
        %v921 = vlaneseq
        %v922 = vshrl.u32 %v921, 7
        %v923 = vsub.s32 %v920, %v922
        %v924 = vrot.slane %v910, %v923
        %v925 = vcombine.low %v901, %v917
        %v926 = vcombine.high %v901, %v917
        %v928 = vunpack.c.l.s4 1934713408
        %v929 = vunpack.c.0.s8 %v928
        %v930 = vlaneseq
        %v931 = vshrl.u32 %v930, 7
        %v932 = vsub.s32 %v929, %v931
        %v933 = vrot.slane %v925, %v932
        %v935 = vunpack.c.l.s4 1934713408
        %v936 = vunpack.c.0.s8 %v935
        %v937 = vlaneseq
        %v938 = vshrl.u32 %v937, 7
        %v939 = vsub.s32 %v936, %v938
        %v940 = vrot.slane %v926, %v939
        %v941 = vcombine.low %v908, %v924
        %v942 = vcombine.high %v908, %v924
        %v944 = vunpack.c.l.s4 1934713408
        %v945 = vunpack.c.0.s8 %v944
        %v946 = vlaneseq
        %v947 = vshrl.u32 %v946, 7
        %v948 = vsub.s32 %v945, %v947
        %v949 = vrot.slane %v941, %v948
        %v951 = vunpack.c.l.s4 1934713408
        %v952 = vunpack.c.0.s8 %v951
        %v953 = vlaneseq
        %v954 = vshrl.u32 %v953, 7
        %v955 = vsub.s32 %v952, %v954
        %v956 = vrot.slane %v942, %v955
        %v957 = vcombine.high %v933, 0.0
        %v958 = vcombine.high %v940, 0.0
        %v959 = vcombine.high %v949, 0.0
        %v960 = vcombine.high %v956, 0.0
        %v961 = vcombine.low %v933, %v940
        %v963 = vunpack.c.l.s4 1983009808
        %v964 = vunpack.c.0.s8 %v963
        %v965 = vlaneseq
        %v966 = vshrl.u32 %v965, 7
        %v967 = vsub.s32 %v964, %v966
        %v968 = vrot.slane %v961, %v967
        %v969 = vcombine.low %v957, %v958
        %v971 = vunpack.c.l.s4 1983009808
        %v972 = vunpack.c.0.s8 %v971
        %v973 = vlaneseq
        %v974 = vshrl.u32 %v973, 7
        %v975 = vsub.s32 %v972, %v974
        %v976 = vrot.slane %v969, %v975
        %v977 = vcombine.low %v949, %v956
        %v979 = vunpack.c.l.s4 1983009808
        %v980 = vunpack.c.0.s8 %v979
        %v981 = vlaneseq
        %v982 = vshrl.u32 %v981, 7
        %v983 = vsub.s32 %v980, %v982
        %v984 = vrot.slane %v977, %v983
        %v985 = vcombine.low %v959, %v960
        %v987 = vunpack.c.l.s4 1983009808
        %v988 = vunpack.c.0.s8 %v987
        %v989 = vlaneseq
        %v990 = vshrl.u32 %v989, 7
        %v991 = vsub.s32 %v988, %v990
        %v992 = vrot.slane %v985, %v991
        %v993 = vcombine.low %v968, %v976
        %v994 = vcombine.high %v968, %v976
        %v996 = vunpack.c.l.s4 1934713408
        %v997 = vunpack.c.0.s8 %v996
        %v998 = vlaneseq
        %v999 = vshrl.u32 %v998, 7
        %v1000 = vsub.s32 %v997, %v999
        %v1001 = vrot.slane %v993, %v1000
        %v1003 = vunpack.c.l.s4 1934713408
        %v1004 = vunpack.c.0.s8 %v1003
        %v1005 = vlaneseq
        %v1006 = vshrl.u32 %v1005, 7
        %v1007 = vsub.s32 %v1004, %v1006
        %v1008 = vrot.slane %v994, %v1007
        %v1009 = vcombine.low %v984, %v992
        %v1010 = vcombine.high %v984, %v992
        %v1012 = vunpack.c.l.s4 1934713408
        %v1013 = vunpack.c.0.s8 %v1012
        %v1014 = vlaneseq
        %v1015 = vshrl.u32 %v1014, 7
        %v1016 = vsub.s32 %v1013, %v1015
        %v1017 = vrot.slane %v1009, %v1016
        %v1019 = vunpack.c.l.s4 1934713408
        %v1020 = vunpack.c.0.s8 %v1019
        %v1021 = vlaneseq
        %v1022 = vshrl.u32 %v1021, 7
        %v1023 = vsub.s32 %v1020, %v1022
        %v1024 = vrot.slane %v1010, %v1023
        %v1025 = vcombine.low %v1001, %v1017
        %v1026 = vcombine.high %v1001, %v1017
        %v1027 = vcombine.low %v1008, %v1024
        %v1028 = vcombine.high %v1008, %v1024
        %v1029 = vpack.c.bf16 %v1025, %v1025
        %v1030 = vpack.c.bf16 %v1026, %v1026
        %v1031 = vpack.c.bf16 %v1027, %v1027
        %v1032 = vpack.c.bf16 %v1028, %v1028
        %v1034 = vlaneseq
        %v1035 = vshrl.u32 %v1034, 7
        %v1036 = vsub.s32 0, %v1035
        %v1037 = vrot.slane %v481, %v1036
        %vm1039 = vcmask 64512
        %v1041 = vsel %vm1039, %v718, 0
        %v1044 = vsel %vm1039, %v877, 0
        %1046 = vmatprep.subr.bf16.mxu0 0
        %1047 = vmatpush1.bf16.xpose.msra.mxu0 0
        %1048 = vmatprep.subr.bf16.mxu0 0
        %1049 = vmatpush1.bf16.xpose.msra.mxu0 0
        %1050 = vmatprep.subr.bf16.mxu0 0
        %1051 = vmatpush1.bf16.xpose.msra.mxu0 0
        %1052 = vmatprep.subr.bf16.mxu0 0
        %1053 = vmatpush1.bf16.xpose.msra.mxu0 0
        %1054 = vmatprep.subr.bf16.mxu0 0
        %1055 = vmatpush1.bf16.xpose.msra.mxu0 0
        %1056 = vmatprep.subr.bf16.mxu0 0
        %1057 = vmatpush1.bf16.xpose.msra.mxu0 0
        %1058 = vmatprep.subr.bf16.mxu0 0
        %1059 = vmatpush1.bf16.xpose.msra.mxu0 0
        %1060 = vmatprep.subr.bf16.mxu0 0
        %1061 = vmatpush1.bf16.xpose.msra.mxu0 %v1044
        %1062 = vmatprep.subr.bf16.mxu0 0
        %1063 = vmatpush2.bf16.xpose.msra.mxu0 0
        %1064 = vmatprep.subr.bf16.mxu0 0
        %1065 = vmatpush2.bf16.xpose.msra.mxu0 0
        %1066 = vmatprep.subr.bf16.mxu0 0
        %1067 = vmatpush2.bf16.xpose.msra.mxu0 0
        %1068 = vmatprep.subr.bf16.mxu0 0
        %1069 = vmatpush2.bf16.xpose.msra.mxu0 0
        %1070 = vmatprep.subr.bf16.mxu0 0
        %1071 = vmatpush2.bf16.xpose.msra.mxu0 0
        %1072 = vmatprep.subr.bf16.mxu0 0
        %1073 = vmatpush2.bf16.xpose.msra.mxu0 0
        %1074 = vmatprep.subr.bf16.mxu0 0
        %1075 = vmatpush2.bf16.xpose.msra.mxu0 0
        %1076 = vmatprep.subr.bf16.mxu0 0
        %1077 = vmatpush2.bf16.xpose.msra.mxu0 0
        %1078 = vmatprep.mubr.bf16.mxu0 0
        %1079 = vmatmul.mubr.bf16.gmra.mxu0 %v1041
        %v1080 = vpop.f32.mrf.mxu0
        %v1081 = vadd.f32 %v1037, %v1080
        %v1082 = vpop.f32.mrf.mxu0
        %v1083 = vpop.f32.mrf.mxu0
        %v1084 = vpop.f32.mrf.mxu0
        %1085 = vdwg.mxu0
        %v1087 = vsel %vm1039, %v719, 0
        %v1090 = vsel %vm1039, %v878, 0
        %1092 = vmatprep.subr.bf16.mxu0 0
        %1093 = vmatpush1.bf16.xpose.msra.mxu0 0
        %1094 = vmatprep.subr.bf16.mxu0 0
        %1095 = vmatpush1.bf16.xpose.msra.mxu0 0
        %1096 = vmatprep.subr.bf16.mxu0 0
        %1097 = vmatpush1.bf16.xpose.msra.mxu0 0
        %1098 = vmatprep.subr.bf16.mxu0 0
        %1099 = vmatpush1.bf16.xpose.msra.mxu0 0
        %1100 = vmatprep.subr.bf16.mxu0 0
        %1101 = vmatpush1.bf16.xpose.msra.mxu0 0
        %1102 = vmatprep.subr.bf16.mxu0 0
        %1103 = vmatpush1.bf16.xpose.msra.mxu0 0
        %1104 = vmatprep.subr.bf16.mxu0 0
        %1105 = vmatpush1.bf16.xpose.msra.mxu0 0
        %1106 = vmatprep.subr.bf16.mxu0 0
        %1107 = vmatpush1.bf16.xpose.msra.mxu0 %v1090
        %1108 = vmatprep.subr.bf16.mxu0 0
        %1109 = vmatpush2.bf16.xpose.msra.mxu0 0
        %1110 = vmatprep.subr.bf16.mxu0 0
        %1111 = vmatpush2.bf16.xpose.msra.mxu0 0
        %1112 = vmatprep.subr.bf16.mxu0 0
        %1113 = vmatpush2.bf16.xpose.msra.mxu0 0
        %1114 = vmatprep.subr.bf16.mxu0 0
        %1115 = vmatpush2.bf16.xpose.msra.mxu0 0
        %1116 = vmatprep.subr.bf16.mxu0 0
        %1117 = vmatpush2.bf16.xpose.msra.mxu0 0
        %1118 = vmatprep.subr.bf16.mxu0 0
        %1119 = vmatpush2.bf16.xpose.msra.mxu0 0
        %1120 = vmatprep.subr.bf16.mxu0 0
        %1121 = vmatpush2.bf16.xpose.msra.mxu0 0
        %1122 = vmatprep.subr.bf16.mxu0 0
        %1123 = vmatpush2.bf16.xpose.msra.mxu0 0
        %1124 = vmatprep.mubr.bf16.mxu0 0
        %1125 = vmatmul.mubr.bf16.gmra.mxu0 %v1087
        %v1126 = vpop.f32.mrf.mxu0
        %v1127 = vadd.f32 %v1037, %v1126
        %v1128 = vpop.f32.mrf.mxu0
        %v1129 = vpop.f32.mrf.mxu0
        %v1130 = vpop.f32.mrf.mxu0
        %1131 = vdwg.mxu0
        %v1133 = vsel %vm1039, %v720, 0
        %v1136 = vsel %vm1039, %v879, 0
        %1138 = vmatprep.subr.bf16.mxu0 0
        %1139 = vmatpush1.bf16.xpose.msra.mxu0 0
        %1140 = vmatprep.subr.bf16.mxu0 0
        %1141 = vmatpush1.bf16.xpose.msra.mxu0 0
        %1142 = vmatprep.subr.bf16.mxu0 0
        %1143 = vmatpush1.bf16.xpose.msra.mxu0 0
        %1144 = vmatprep.subr.bf16.mxu0 0
        %1145 = vmatpush1.bf16.xpose.msra.mxu0 0
        %1146 = vmatprep.subr.bf16.mxu0 0
        %1147 = vmatpush1.bf16.xpose.msra.mxu0 0
        %1148 = vmatprep.subr.bf16.mxu0 0
        %1149 = vmatpush1.bf16.xpose.msra.mxu0 0
        %1150 = vmatprep.subr.bf16.mxu0 0
        %1151 = vmatpush1.bf16.xpose.msra.mxu0 0
        %1152 = vmatprep.subr.bf16.mxu0 0
        %1153 = vmatpush1.bf16.xpose.msra.mxu0 %v1136
        %1154 = vmatprep.subr.bf16.mxu0 0
        %1155 = vmatpush2.bf16.xpose.msra.mxu0 0
        %1156 = vmatprep.subr.bf16.mxu0 0
        %1157 = vmatpush2.bf16.xpose.msra.mxu0 0
        %1158 = vmatprep.subr.bf16.mxu0 0
        %1159 = vmatpush2.bf16.xpose.msra.mxu0 0
        %1160 = vmatprep.subr.bf16.mxu0 0
        %1161 = vmatpush2.bf16.xpose.msra.mxu0 0
        %1162 = vmatprep.subr.bf16.mxu0 0
        %1163 = vmatpush2.bf16.xpose.msra.mxu0 0
        %1164 = vmatprep.subr.bf16.mxu0 0
        %1165 = vmatpush2.bf16.xpose.msra.mxu0 0
        %1166 = vmatprep.subr.bf16.mxu0 0
        %1167 = vmatpush2.bf16.xpose.msra.mxu0 0
        %1168 = vmatprep.subr.bf16.mxu0 0
        %1169 = vmatpush2.bf16.xpose.msra.mxu0 0
        %1170 = vmatprep.mubr.bf16.mxu0 0
        %1171 = vmatmul.mubr.bf16.gmra.mxu0 %v1133
        %v1172 = vpop.f32.mrf.mxu0
        %v1173 = vadd.f32 %v1037, %v1172
        %v1174 = vpop.f32.mrf.mxu0
        %v1175 = vpop.f32.mrf.mxu0
        %v1176 = vpop.f32.mrf.mxu0
        %1177 = vdwg.mxu0
        %v1179 = vsel %vm1039, %v721, 0
        %v1182 = vsel %vm1039, %v880, 0
        %1184 = vmatprep.subr.bf16.mxu0 0
        %1185 = vmatpush1.bf16.xpose.msra.mxu0 0
        %1186 = vmatprep.subr.bf16.mxu0 0
        %1187 = vmatpush1.bf16.xpose.msra.mxu0 0
        %1188 = vmatprep.subr.bf16.mxu0 0
        %1189 = vmatpush1.bf16.xpose.msra.mxu0 0
        %1190 = vmatprep.subr.bf16.mxu0 0
        %1191 = vmatpush1.bf16.xpose.msra.mxu0 0
        %1192 = vmatprep.subr.bf16.mxu0 0
        %1193 = vmatpush1.bf16.xpose.msra.mxu0 0
        %1194 = vmatprep.subr.bf16.mxu0 0
        %1195 = vmatpush1.bf16.xpose.msra.mxu0 0
        %1196 = vmatprep.subr.bf16.mxu0 0
        %1197 = vmatpush1.bf16.xpose.msra.mxu0 0
        %1198 = vmatprep.subr.bf16.mxu0 0
        %1199 = vmatpush1.bf16.xpose.msra.mxu0 %v1182
        %1200 = vmatprep.subr.bf16.mxu0 0
        %1201 = vmatpush2.bf16.xpose.msra.mxu0 0
        %1202 = vmatprep.subr.bf16.mxu0 0
        %1203 = vmatpush2.bf16.xpose.msra.mxu0 0
        %1204 = vmatprep.subr.bf16.mxu0 0
        %1205 = vmatpush2.bf16.xpose.msra.mxu0 0
        %1206 = vmatprep.subr.bf16.mxu0 0
        %1207 = vmatpush2.bf16.xpose.msra.mxu0 0
        %1208 = vmatprep.subr.bf16.mxu0 0
        %1209 = vmatpush2.bf16.xpose.msra.mxu0 0
        %1210 = vmatprep.subr.bf16.mxu0 0
        %1211 = vmatpush2.bf16.xpose.msra.mxu0 0
        %1212 = vmatprep.subr.bf16.mxu0 0
        %1213 = vmatpush2.bf16.xpose.msra.mxu0 0
        %1214 = vmatprep.subr.bf16.mxu0 0
        %1215 = vmatpush2.bf16.xpose.msra.mxu0 0
        %1216 = vmatprep.mubr.bf16.mxu0 0
        %1217 = vmatmul.mubr.bf16.gmra.mxu0 %v1179
        %v1218 = vpop.f32.mrf.mxu0
        %v1219 = vadd.f32 %v1037, %v1218
        %v1220 = vpop.f32.mrf.mxu0
        %v1221 = vpop.f32.mrf.mxu0
        %v1222 = vpop.f32.mrf.mxu0
        %1223 = vdwg.mxu0
        %v1224 = vsel %vm1039, %v1081, -inf
        %1225 = vmax.xlane.f32.xlu0 %v1224
        %v1226 = vpop.xlane.xlu0 %1225
        %v1227 = vsel %vm1039, %v1127, -inf
        %1228 = vmax.xlane.f32.xlu0 %v1227
        %v1229 = vpop.xlane.xlu0 %1228
        %v1230 = vsel %vm1039, %v1173, -inf
        %1231 = vmax.xlane.f32.xlu0 %v1230
        %v1232 = vpop.xlane.xlu0 %1231
        %v1233 = vsel %vm1039, %v1219, -inf
        %1234 = vmax.xlane.f32.xlu0 %v1233
        %v1235 = vpop.xlane.xlu0 %1234
        %v1236 = vsub.f32 %v1081, %v1226
        %v1237 = vsub.f32 %v1127, %v1229
        %v1238 = vsub.f32 %v1173, %v1232
        %v1239 = vsub.f32 %v1219, %v1235
        %v1240 = vmul.f32 %v1236, 1.442695
        %v1241 = vpow.pop %v1240
        %v1242 = vmul.f32 %v1237, 1.442695
        %v1243 = vpow.pop %v1242
        %v1244 = vmul.f32 %v1238, 1.442695
        %v1245 = vpow.pop %v1244
        %v1246 = vmul.f32 %v1239, 1.442695
        %v1247 = vpow.pop %v1246
        %v1248 = vsel %vm1039, %v1241, 0.0
        %1249 = vadd.xlane.f32.xlu0 %v1248
        %v1250 = vpop.xlane.xlu0 %1249
        %v1251 = vsel %vm1039, %v1243, 0.0
        %1252 = vadd.xlane.f32.xlu0 %v1251
        %v1253 = vpop.xlane.xlu0 %1252
        %v1254 = vsel %vm1039, %v1245, 0.0
        %1255 = vadd.xlane.f32.xlu0 %v1254
        %v1256 = vpop.xlane.xlu0 %1255
        %v1257 = vsel %vm1039, %v1247, 0.0
        %1258 = vadd.xlane.f32.xlu0 %v1257
        %v1259 = vpop.xlane.xlu0 %1258
        %v1260 = vrcp.pop %v1250
        %v1261 = vrcp.pop %v1253
        %v1262 = vrcp.pop %v1256
        %v1263 = vrcp.pop %v1259
        %v1264 = vmul.f32 %v1241, %v1260
        %v1265 = vmul.f32 %v1243, %v1261
        %v1266 = vmul.f32 %v1245, %v1262
        %v1267 = vmul.f32 %v1247, %v1263
        %v1268 = vpack.c.bf16 %v1264, %v1264
        %v1269 = vpack.c.bf16 %v1265, %v1265
        %v1270 = vpack.c.bf16 %v1266, %v1266
        %v1271 = vpack.c.bf16 %v1267, %v1267
        %v1273 = vsel %vm1039, %v1268, 0
        %vm1275 = vcmask 1043456
        %v1277 = vsel %vm1275, %v1029, 0
        %1279 = vmatprep.subr.bf16.mxu0 0
        %1280 = vmatpush1.bf16.msra.mxu0 0
        %1281 = vmatprep.subr.bf16.mxu0 0
        %1282 = vmatpush1.bf16.msra.mxu0 0
        %1283 = vmatprep.subr.bf16.mxu0 0
        %1284 = vmatpush1.bf16.msra.mxu0 0
        %1285 = vmatprep.subr.bf16.mxu0 0
        %1286 = vmatpush1.bf16.msra.mxu0 0
        %1287 = vmatprep.subr.bf16.mxu0 0
        %1288 = vmatpush1.bf16.msra.mxu0 0
        %1289 = vmatprep.subr.bf16.mxu0 0
        %1290 = vmatpush1.bf16.msra.mxu0 0
        %1291 = vmatprep.subr.bf16.mxu0 0
        %1292 = vmatpush1.bf16.msra.mxu0 0
        %1293 = vmatprep.subr.bf16.mxu0 0
        %1294 = vmatpush1.bf16.msra.mxu0 %v1277
        %1295 = vmatprep.subr.bf16.mxu0 0
        %1296 = vmatpush2.bf16.msra.mxu0 0
        %1297 = vmatprep.subr.bf16.mxu0 0
        %1298 = vmatpush2.bf16.msra.mxu0 0
        %1299 = vmatprep.subr.bf16.mxu0 0
        %1300 = vmatpush2.bf16.msra.mxu0 0
        %1301 = vmatprep.subr.bf16.mxu0 0
        %1302 = vmatpush2.bf16.msra.mxu0 0
        %1303 = vmatprep.subr.bf16.mxu0 0
        %1304 = vmatpush2.bf16.msra.mxu0 0
        %1305 = vmatprep.subr.bf16.mxu0 0
        %1306 = vmatpush2.bf16.msra.mxu0 0
        %1307 = vmatprep.subr.bf16.mxu0 0
        %1308 = vmatpush2.bf16.msra.mxu0 0
        %1309 = vmatprep.subr.bf16.mxu0 0
        %1310 = vmatpush2.bf16.msra.mxu0 0
        %1311 = vmatprep.mubr.bf16.mxu0 0
        %1312 = vmatmul.mubr.bf16.gmra.mxu0 %v1273
        %v1313 = vpop.f32.mrf.mxu0
        %v1314 = vadd.f32 0.0, %v1313
        %v1315 = vpop.f32.mrf.mxu0
        %v1316 = vpop.f32.mrf.mxu0
        %v1317 = vpop.f32.mrf.mxu0
        %1318 = vdwg.mxu0
        %v1320 = vsel %vm1039, %v1269, 0
        %v1323 = vsel %vm1275, %v1030, 0
        %1325 = vmatprep.subr.bf16.mxu0 0
        %1326 = vmatpush1.bf16.msra.mxu0 0
        %1327 = vmatprep.subr.bf16.mxu0 0
        %1328 = vmatpush1.bf16.msra.mxu0 0
        %1329 = vmatprep.subr.bf16.mxu0 0
        %1330 = vmatpush1.bf16.msra.mxu0 0
        %1331 = vmatprep.subr.bf16.mxu0 0
        %1332 = vmatpush1.bf16.msra.mxu0 0
        %1333 = vmatprep.subr.bf16.mxu0 0
        %1334 = vmatpush1.bf16.msra.mxu0 0
        %1335 = vmatprep.subr.bf16.mxu0 0
        %1336 = vmatpush1.bf16.msra.mxu0 0
        %1337 = vmatprep.subr.bf16.mxu0 0
        %1338 = vmatpush1.bf16.msra.mxu0 0
        %1339 = vmatprep.subr.bf16.mxu0 0
        %1340 = vmatpush1.bf16.msra.mxu0 %v1323
        %1341 = vmatprep.subr.bf16.mxu0 0
        %1342 = vmatpush2.bf16.msra.mxu0 0
        %1343 = vmatprep.subr.bf16.mxu0 0
        %1344 = vmatpush2.bf16.msra.mxu0 0
        %1345 = vmatprep.subr.bf16.mxu0 0
        %1346 = vmatpush2.bf16.msra.mxu0 0
        %1347 = vmatprep.subr.bf16.mxu0 0
        %1348 = vmatpush2.bf16.msra.mxu0 0
        %1349 = vmatprep.subr.bf16.mxu0 0
        %1350 = vmatpush2.bf16.msra.mxu0 0
        %1351 = vmatprep.subr.bf16.mxu0 0
        %1352 = vmatpush2.bf16.msra.mxu0 0
        %1353 = vmatprep.subr.bf16.mxu0 0
        %1354 = vmatpush2.bf16.msra.mxu0 0
        %1355 = vmatprep.subr.bf16.mxu0 0
        %1356 = vmatpush2.bf16.msra.mxu0 0
        %1357 = vmatprep.mubr.bf16.mxu0 0
        %1358 = vmatmul.mubr.bf16.gmra.mxu0 %v1320
        %v1359 = vpop.f32.mrf.mxu0
        %v1360 = vadd.f32 0.0, %v1359
        %v1361 = vpop.f32.mrf.mxu0
        %v1362 = vpop.f32.mrf.mxu0
        %v1363 = vpop.f32.mrf.mxu0
        %1364 = vdwg.mxu0
        %v1366 = vsel %vm1039, %v1270, 0
        %v1369 = vsel %vm1275, %v1031, 0
        %1371 = vmatprep.subr.bf16.mxu0 0
        %1372 = vmatpush1.bf16.msra.mxu0 0
        %1373 = vmatprep.subr.bf16.mxu0 0
        %1374 = vmatpush1.bf16.msra.mxu0 0
        %1375 = vmatprep.subr.bf16.mxu0 0
        %1376 = vmatpush1.bf16.msra.mxu0 0
        %1377 = vmatprep.subr.bf16.mxu0 0
        %1378 = vmatpush1.bf16.msra.mxu0 0
        %1379 = vmatprep.subr.bf16.mxu0 0
        %1380 = vmatpush1.bf16.msra.mxu0 0
        %1381 = vmatprep.subr.bf16.mxu0 0
        %1382 = vmatpush1.bf16.msra.mxu0 0
        %1383 = vmatprep.subr.bf16.mxu0 0
        %1384 = vmatpush1.bf16.msra.mxu0 0
        %1385 = vmatprep.subr.bf16.mxu0 0
        %1386 = vmatpush1.bf16.msra.mxu0 %v1369
        %1387 = vmatprep.subr.bf16.mxu0 0
        %1388 = vmatpush2.bf16.msra.mxu0 0
        %1389 = vmatprep.subr.bf16.mxu0 0
        %1390 = vmatpush2.bf16.msra.mxu0 0
        %1391 = vmatprep.subr.bf16.mxu0 0
        %1392 = vmatpush2.bf16.msra.mxu0 0
        %1393 = vmatprep.subr.bf16.mxu0 0
        %1394 = vmatpush2.bf16.msra.mxu0 0
        %1395 = vmatprep.subr.bf16.mxu0 0
        %1396 = vmatpush2.bf16.msra.mxu0 0
        %1397 = vmatprep.subr.bf16.mxu0 0
        %1398 = vmatpush2.bf16.msra.mxu0 0
        %1399 = vmatprep.subr.bf16.mxu0 0
        %1400 = vmatpush2.bf16.msra.mxu0 0
        %1401 = vmatprep.subr.bf16.mxu0 0
        %1402 = vmatpush2.bf16.msra.mxu0 0
        %1403 = vmatprep.mubr.bf16.mxu0 0
        %1404 = vmatmul.mubr.bf16.gmra.mxu0 %v1366
        %v1405 = vpop.f32.mrf.mxu0
        %v1406 = vadd.f32 0.0, %v1405
        %v1407 = vpop.f32.mrf.mxu0
        %v1408 = vpop.f32.mrf.mxu0
        %v1409 = vpop.f32.mrf.mxu0
        %1410 = vdwg.mxu0
        %v1412 = vsel %vm1039, %v1271, 0
        %v1415 = vsel %vm1275, %v1032, 0
        %1417 = vmatprep.subr.bf16.mxu0 0
        %1418 = vmatpush1.bf16.msra.mxu0 0
        %1419 = vmatprep.subr.bf16.mxu0 0
        %1420 = vmatpush1.bf16.msra.mxu0 0
        %1421 = vmatprep.subr.bf16.mxu0 0
        %1422 = vmatpush1.bf16.msra.mxu0 0
        %1423 = vmatprep.subr.bf16.mxu0 0
        %1424 = vmatpush1.bf16.msra.mxu0 0
        %1425 = vmatprep.subr.bf16.mxu0 0
        %1426 = vmatpush1.bf16.msra.mxu0 0
        %1427 = vmatprep.subr.bf16.mxu0 0
        %1428 = vmatpush1.bf16.msra.mxu0 0
        %1429 = vmatprep.subr.bf16.mxu0 0
        %1430 = vmatpush1.bf16.msra.mxu0 0
        %1431 = vmatprep.subr.bf16.mxu0 0
        %1432 = vmatpush1.bf16.msra.mxu0 %v1415
        %1433 = vmatprep.subr.bf16.mxu0 0
        %1434 = vmatpush2.bf16.msra.mxu0 0
        %1435 = vmatprep.subr.bf16.mxu0 0
        %1436 = vmatpush2.bf16.msra.mxu0 0
        %1437 = vmatprep.subr.bf16.mxu0 0
        %1438 = vmatpush2.bf16.msra.mxu0 0
        %1439 = vmatprep.subr.bf16.mxu0 0
        %1440 = vmatpush2.bf16.msra.mxu0 0
        %1441 = vmatprep.subr.bf16.mxu0 0
        %1442 = vmatpush2.bf16.msra.mxu0 0
        %1443 = vmatprep.subr.bf16.mxu0 0
        %1444 = vmatpush2.bf16.msra.mxu0 0
        %1445 = vmatprep.subr.bf16.mxu0 0
        %1446 = vmatpush2.bf16.msra.mxu0 0
        %1447 = vmatprep.subr.bf16.mxu0 0
        %1448 = vmatpush2.bf16.msra.mxu0 0
        %1449 = vmatprep.mubr.bf16.mxu0 0
        %1450 = vmatmul.mubr.bf16.gmra.mxu0 %v1412
        %v1451 = vpop.f32.mrf.mxu0
        %v1452 = vadd.f32 0.0, %v1451
        %v1453 = vpop.f32.mrf.mxu0
        %v1454 = vpop.f32.mrf.mxu0
        %v1455 = vpop.f32.mrf.mxu0
        %1456 = vdwg.mxu0
        %v1457 = vcombine.low %v1314, %v1406
        %v1458 = vcombine.high %v1314, %v1406
        %v1460 = vunpack.c.l.s4 1983009808
        %v1461 = vunpack.c.0.s8 %v1460
        %v1462 = vlaneseq
        %v1463 = vshrl.u32 %v1462, 7
        %v1464 = vsub.s32 %v1461, %v1463
        %v1465 = vrot.slane %v1457, %v1464
        %v1467 = vunpack.c.l.s4 1983009808
        %v1468 = vunpack.c.0.s8 %v1467
        %v1469 = vlaneseq
        %v1470 = vshrl.u32 %v1469, 7
        %v1471 = vsub.s32 %v1468, %v1470
        %v1472 = vrot.slane %v1458, %v1471
        %v1473 = vcombine.low %v1360, %v1452
        %v1474 = vcombine.high %v1360, %v1452
        %v1476 = vunpack.c.l.s4 1983009808
        %v1477 = vunpack.c.0.s8 %v1476
        %v1478 = vlaneseq
        %v1479 = vshrl.u32 %v1478, 7
        %v1480 = vsub.s32 %v1477, %v1479
        %v1481 = vrot.slane %v1473, %v1480
        %v1483 = vunpack.c.l.s4 1983009808
        %v1484 = vunpack.c.0.s8 %v1483
        %v1485 = vlaneseq
        %v1486 = vshrl.u32 %v1485, 7
        %v1487 = vsub.s32 %v1484, %v1486
        %v1488 = vrot.slane %v1474, %v1487
        %v1489 = vcombine.low %v1465, %v1481
        %v1490 = vcombine.high %v1465, %v1481
        %v1492 = vunpack.c.l.s4 1934713408
        %v1493 = vunpack.c.0.s8 %v1492
        %v1494 = vlaneseq
        %v1495 = vshrl.u32 %v1494, 7
        %v1496 = vsub.s32 %v1493, %v1495
        %v1497 = vrot.slane %v1489, %v1496
        %v1499 = vunpack.c.l.s4 1934713408
        %v1500 = vunpack.c.0.s8 %v1499
        %v1501 = vlaneseq
        %v1502 = vshrl.u32 %v1501, 7
        %v1503 = vsub.s32 %v1500, %v1502
        %v1504 = vrot.slane %v1490, %v1503
        %v1505 = vcombine.low %v1472, %v1488
        %v1506 = vcombine.high %v1472, %v1488
        %v1508 = vunpack.c.l.s4 1934713408
        %v1509 = vunpack.c.0.s8 %v1508
        %v1510 = vlaneseq
        %v1511 = vshrl.u32 %v1510, 7
        %v1512 = vsub.s32 %v1509, %v1511
        %v1513 = vrot.slane %v1505, %v1512
        %v1515 = vunpack.c.l.s4 1934713408
        %v1516 = vunpack.c.0.s8 %v1515
        %v1517 = vlaneseq
        %v1518 = vshrl.u32 %v1517, 7
        %v1519 = vsub.s32 %v1516, %v1518
        %v1520 = vrot.slane %v1506, %v1519
        %v1521 = vcombine.high %v1497, 0.0
        %v1522 = vcombine.high %v1504, 0.0
        %v1523 = vcombine.high %v1513, 0.0
        %v1524 = vcombine.high %v1520, 0.0
        %v1525 = vcombine.low %v1497, %v1504
        %v1527 = vunpack.c.l.s4 1983009808
        %v1528 = vunpack.c.0.s8 %v1527
        %v1529 = vlaneseq
        %v1530 = vshrl.u32 %v1529, 7
        %v1531 = vsub.s32 %v1528, %v1530
        %v1532 = vrot.slane %v1525, %v1531
        %v1533 = vcombine.low %v1521, %v1522
        %v1535 = vunpack.c.l.s4 1983009808
        %v1536 = vunpack.c.0.s8 %v1535
        %v1537 = vlaneseq
        %v1538 = vshrl.u32 %v1537, 7
        %v1539 = vsub.s32 %v1536, %v1538
        %v1540 = vrot.slane %v1533, %v1539
        %v1541 = vcombine.low %v1513, %v1520
        %v1543 = vunpack.c.l.s4 1983009808
        %v1544 = vunpack.c.0.s8 %v1543
        %v1545 = vlaneseq
        %v1546 = vshrl.u32 %v1545, 7
        %v1547 = vsub.s32 %v1544, %v1546
        %v1548 = vrot.slane %v1541, %v1547
        %v1549 = vcombine.low %v1523, %v1524
        %v1551 = vunpack.c.l.s4 1983009808
        %v1552 = vunpack.c.0.s8 %v1551
        %v1553 = vlaneseq
        %v1554 = vshrl.u32 %v1553, 7
        %v1555 = vsub.s32 %v1552, %v1554
        %v1556 = vrot.slane %v1549, %v1555
        %v1557 = vcombine.low %v1532, %v1540
        %v1558 = vcombine.high %v1532, %v1540
        %v1560 = vunpack.c.l.s4 1934713408
        %v1561 = vunpack.c.0.s8 %v1560
        %v1562 = vlaneseq
        %v1563 = vshrl.u32 %v1562, 7
        %v1564 = vsub.s32 %v1561, %v1563
        %v1565 = vrot.slane %v1557, %v1564
        %v1567 = vunpack.c.l.s4 1934713408
        %v1568 = vunpack.c.0.s8 %v1567
        %v1569 = vlaneseq
        %v1570 = vshrl.u32 %v1569, 7
        %v1571 = vsub.s32 %v1568, %v1570
        %v1572 = vrot.slane %v1558, %v1571
        %v1573 = vcombine.low %v1548, %v1556
        %v1574 = vcombine.high %v1548, %v1556
        %v1576 = vunpack.c.l.s4 1934713408
        %v1577 = vunpack.c.0.s8 %v1576
        %v1578 = vlaneseq
        %v1579 = vshrl.u32 %v1578, 7
        %v1580 = vsub.s32 %v1577, %v1579
        %v1581 = vrot.slane %v1573, %v1580
        %v1583 = vunpack.c.l.s4 1934713408
        %v1584 = vunpack.c.0.s8 %v1583
        %v1585 = vlaneseq
        %v1586 = vshrl.u32 %v1585, 7
        %v1587 = vsub.s32 %v1584, %v1586
        %v1588 = vrot.slane %v1574, %v1587
        %v1589 = vcombine.low %v1565, %v1581
        %v1590 = vcombine.high %v1565, %v1581
        %v1591 = vcombine.low %v1572, %v1588
        %v1592 = vcombine.high %v1572, %v1588
        %1594 = vrot.lane.b32.xlu0 %v1590, 8
        %v1595 = vpop.permute.xlu0 %1594
        %1598 = vrot.lane.b32.xlu0 %v1591, 16
        %v1599 = vpop.permute.xlu0 %1598
        %1602 = vrot.lane.b32.xlu0 %v1592, 24
        %v1603 = vpop.permute.xlu0 %1602
        %v1605 = vsel %vm1039, %v1589, %v1595
        %vm1606 = vcmask 130048
        %v1607 = vsel %vm1606, %v1605, %v1599
        %vm1608 = vcmask 195584
        %v1609 = vsel %vm1608, %v1607, %v1603
        %v1610 = vpack.c.bf16 %v1609, %v1609
        %v1611 = vld [vmem:[%s453] sm:$0xf]
        %v1612 = vld [vmem:[%s453 + $0x4] sm:$0xf]
        %v1613 = vld [vmem:[%s453 + $0x8] sm:$0xf]
        %v1614 = vld [vmem:[%s453 + $0xc] sm:$0xf]
        %v1615 = vlaneseq
        %v1616 = vshrl.u32 %v1615, 7
        %v1617 = vsub.s32 1, %v1616
        %v1618 = vrot.slane %v478, %v1617
        %v1623 = vunpack.c.l.b16 %v1611
        %v1624 = vunpack.c.l.b16 %v1612
        %v1625 = vunpack.c.l.b16 %v1613
        %v1626 = vunpack.c.l.b16 %v1614
        %v1627 = vpack.c.b16 %v1624, %v1623
        %v1628 = vpack.c.b16 %v1626, %v1625
        %v1632 = vsel %vm482, %v1610, 0
        %1634 = vmatprep.subr.bf16.mxu0 0
        %1635 = vmatpush1.bf16.msra.mxu0 0
        %1636 = vmatprep.subr.bf16.mxu0 0
        %1637 = vmatpush1.bf16.msra.mxu0 0
        %1638 = vmatprep.subr.bf16.mxu0 0
        %1639 = vmatpush1.bf16.msra.mxu0 0
        %1640 = vmatprep.subr.bf16.mxu0 0
        %1641 = vmatpush1.bf16.msra.mxu0 0
        %1642 = vmatprep.subr.bf16.mxu0 0
        %1643 = vmatpush1.bf16.msra.mxu0 0
        %1644 = vmatprep.subr.bf16.mxu0 0
        %1645 = vmatpush1.bf16.msra.mxu0 0
        %1646 = vmatprep.subr.bf16.mxu0 0
        %1647 = vmatpush1.bf16.msra.mxu0 %v1628
        %1648 = vmatprep.subr.bf16.mxu0 0
        %1649 = vmatpush1.bf16.msra.mxu0 %v1627
        %1650 = vmatprep.subr.bf16.mxu0 0
        %1651 = vmatpush2.bf16.msra.mxu0 0
        %1652 = vmatprep.subr.bf16.mxu0 0
        %1653 = vmatpush2.bf16.msra.mxu0 0
        %1654 = vmatprep.subr.bf16.mxu0 0
        %1655 = vmatpush2.bf16.msra.mxu0 0
        %1656 = vmatprep.subr.bf16.mxu0 0
        %1657 = vmatpush2.bf16.msra.mxu0 0
        %1658 = vmatprep.subr.bf16.mxu0 0
        %1659 = vmatpush2.bf16.msra.mxu0 0
        %1660 = vmatprep.subr.bf16.mxu0 0
        %1661 = vmatpush2.bf16.msra.mxu0 0
        %1662 = vmatprep.subr.bf16.mxu0 0
        %1663 = vmatpush2.bf16.msra.mxu0 0
        %1664 = vmatprep.subr.bf16.mxu0 0
        %1665 = vmatpush2.bf16.msra.mxu0 0
        %1666 = vmatprep.mubr.bf16.mxu0 0
        %1667 = vmatmul.mubr.bf16.gmra.mxu0 %v1632
        %v1668 = vpop.f32.mrf.mxu0
        %v1669 = vadd.f32 %v1618, %v1668
        %v1670 = vpop.f32.mrf.mxu0
        %v1671 = vpop.f32.mrf.mxu0
        %v1672 = vpop.f32.mrf.mxu0
        %1673 = vdwg.mxu0
        %v1674 = vadd.f32 %v476, %v1669
        %v1675 = vsel %vm482, %v1674, 0.0
        %1676 = vadd.xlane.f32.xlu0 %v1675
        %v1677 = vpop.xlane.xlu0 %1676
        %v1678 = vmul.f32 %v1677, %v486
        %v1679 = vsub.f32 %v1674, %v1678
        %v1680 = vmul.f32 %v1679, %v1679
        %v1681 = vsel %vm482, %v1680, 0.0
        %1682 = vadd.xlane.f32.xlu0 %v1681
        %v1683 = vpop.xlane.xlu0 %1682
        %v1684 = vmul.f32 %v1683, %v486
        %v1685 = vadd.f32 %v1684, 1e-06
        %v1686 = vrsqrt.pop %v1685
        %v1687 = vmul.f32 %v1679, %v1686
        %v1688 = vlaneseq
        %v1689 = vshrl.u32 %v1688, 7
        %v1690 = vsub.s32 2, %v1689
        %v1691 = vrot.slane %v477, %v1690
        %v1692 = vmul.f32 %v1687, %v1691
        %v1693 = vlaneseq
        %v1694 = vshrl.u32 %v1693, 7
        %v1695 = vsub.s32 3, %v1694
        %v1696 = vrot.slane %v477, %v1695
        %v1697 = vadd.f32 %v1692, %v1696
        %v1698 = vpack.c.bf16 %v1697, %v1697
        %v1699 = vld [vmem:[%s458] sm:$0xf]
        %v1700 = vld [vmem:[%s458 + $0x4] sm:$0xf]
        %v1701 = vld [vmem:[%s458 + $0x8] sm:$0xf]
        %v1702 = vld [vmem:[%s458 + $0xc] sm:$0xf]
        %v1703 = vlaneseq
        %v1704 = vshrl.u32 %v1703, 7
        %v1705 = vsub.s32 2, %v1704
        %v1706 = vrot.slane %v478, %v1705
        %v1711 = vunpack.c.l.b16 %v1699
        %v1712 = vunpack.c.l.b16 %v1700
        %v1713 = vunpack.c.l.b16 %v1701
        %v1714 = vunpack.c.l.b16 %v1702
        %v1715 = vpack.c.b16 %v1712, %v1711
        %v1716 = vpack.c.b16 %v1714, %v1713
        %v1720 = vsel %vm482, %v1698, 0
        %1722 = vmatprep.subr.bf16.mxu0 0
        %1723 = vmatpush1.bf16.msra.mxu0 0
        %1724 = vmatprep.subr.bf16.mxu0 0
        %1725 = vmatpush1.bf16.msra.mxu0 0
        %1726 = vmatprep.subr.bf16.mxu0 0
        %1727 = vmatpush1.bf16.msra.mxu0 0
        %1728 = vmatprep.subr.bf16.mxu0 0
        %1729 = vmatpush1.bf16.msra.mxu0 0
        %1730 = vmatprep.subr.bf16.mxu0 0
        %1731 = vmatpush1.bf16.msra.mxu0 0
        %1732 = vmatprep.subr.bf16.mxu0 0
        %1733 = vmatpush1.bf16.msra.mxu0 0
        %1734 = vmatprep.subr.bf16.mxu0 0
        %1735 = vmatpush1.bf16.msra.mxu0 %v1716
        %1736 = vmatprep.subr.bf16.mxu0 0
        %1737 = vmatpush1.bf16.msra.mxu0 %v1715
        %1738 = vmatprep.subr.bf16.mxu0 0
        %1739 = vmatpush2.bf16.msra.mxu0 0
        %1740 = vmatprep.subr.bf16.mxu0 0
        %1741 = vmatpush2.bf16.msra.mxu0 0
        %1742 = vmatprep.subr.bf16.mxu0 0
        %1743 = vmatpush2.bf16.msra.mxu0 0
        %1744 = vmatprep.subr.bf16.mxu0 0
        %1745 = vmatpush2.bf16.msra.mxu0 0
        %1746 = vmatprep.subr.bf16.mxu0 0
        %1747 = vmatpush2.bf16.msra.mxu0 0
        %1748 = vmatprep.subr.bf16.mxu0 0
        %1749 = vmatpush2.bf16.msra.mxu0 0
        %1750 = vmatprep.subr.bf16.mxu0 0
        %1751 = vmatpush2.bf16.msra.mxu0 0
        %1752 = vmatprep.subr.bf16.mxu0 0
        %1753 = vmatpush2.bf16.msra.mxu0 0
        %1754 = vmatprep.mubr.bf16.mxu0 0
        %1755 = vmatmul.mubr.bf16.gmra.mxu0 %v1720
        %v1756 = vpop.f32.mrf.mxu0
        %v1757 = vadd.f32 %v1706, %v1756
        %v1758 = vpop.f32.mrf.mxu0
        %v1759 = vpop.f32.mrf.mxu0
        %v1760 = vpop.f32.mrf.mxu0
        %1761 = vdwg.mxu0
        %v1762 = vmax.f32 %v1757, 0.0
        %v1763 = vpack.c.bf16 %v1762, %v1762
        %v1764 = vld [vmem:[%s463] sm:$0xf]
        %v1765 = vld [vmem:[%s463 + $0x4] sm:$0xf]
        %v1766 = vld [vmem:[%s463 + $0x8] sm:$0xf]
        %v1767 = vld [vmem:[%s463 + $0xc] sm:$0xf]
        %v1768 = vld [vmem:[%s463 + $0x10] sm:$0xf]
        %v1769 = vld [vmem:[%s463 + $0x14] sm:$0xf]
        %v1770 = vld [vmem:[%s463 + $0x18] sm:$0xf]
        %v1771 = vld [vmem:[%s463 + $0x1c] sm:$0xf]
        %v1772 = vld [vmem:[%s463 + $0x20] sm:$0xf]
        %v1773 = vld [vmem:[%s463 + $0x24] sm:$0xf]
        %v1774 = vld [vmem:[%s463 + $0x28] sm:$0xf]
        %v1775 = vld [vmem:[%s463 + $0x2c] sm:$0xf]
        %v1776 = vld [vmem:[%s463 + $0x30] sm:$0xf]
        %v1777 = vld [vmem:[%s463 + $0x34] sm:$0xf]
        %v1778 = vld [vmem:[%s463 + $0x38] sm:$0xf]
        %v1779 = vld [vmem:[%s463 + $0x3c] sm:$0xf]
        %v1780 = vlaneseq
        %v1781 = vshrl.u32 %v1780, 7
        %v1782 = vsub.s32 3, %v1781
        %v1783 = vrot.slane %v478, %v1782
        %v1800 = vunpack.c.l.b16 %v1764
        %v1801 = vunpack.c.l.b16 %v1765
        %v1802 = vunpack.c.l.b16 %v1766
        %v1803 = vunpack.c.l.b16 %v1767
        %v1804 = vunpack.c.l.b16 %v1768
        %v1805 = vunpack.c.l.b16 %v1769
        %v1806 = vunpack.c.l.b16 %v1770
        %v1807 = vunpack.c.l.b16 %v1771
        %v1808 = vunpack.c.l.b16 %v1772
        %v1809 = vunpack.c.l.b16 %v1773
        %v1810 = vunpack.c.l.b16 %v1774
        %v1811 = vunpack.c.l.b16 %v1775
        %v1812 = vunpack.c.l.b16 %v1776
        %v1813 = vunpack.c.l.b16 %v1777
        %v1814 = vunpack.c.l.b16 %v1778
        %v1815 = vunpack.c.l.b16 %v1779
        %v1816 = vpack.c.b16 %v1801, %v1800
        %v1817 = vpack.c.b16 %v1803, %v1802
        %v1818 = vpack.c.b16 %v1805, %v1804
        %v1819 = vpack.c.b16 %v1807, %v1806
        %v1820 = vpack.c.b16 %v1809, %v1808
        %v1821 = vpack.c.b16 %v1811, %v1810
        %v1822 = vpack.c.b16 %v1813, %v1812
        %v1823 = vpack.c.b16 %v1815, %v1814
        %1832 = vmatprep.subr.bf16.mxu0 0
        %1833 = vmatpush1.bf16.msra.mxu0 %v1823
        %1834 = vmatprep.subr.bf16.mxu0 0
        %1835 = vmatpush1.bf16.msra.mxu0 %v1822
        %1836 = vmatprep.subr.bf16.mxu0 0
        %1837 = vmatpush1.bf16.msra.mxu0 %v1821
        %1838 = vmatprep.subr.bf16.mxu0 0
        %1839 = vmatpush1.bf16.msra.mxu0 %v1820
        %1840 = vmatprep.subr.bf16.mxu0 0
        %1841 = vmatpush1.bf16.msra.mxu0 %v1819
        %1842 = vmatprep.subr.bf16.mxu0 0
        %1843 = vmatpush1.bf16.msra.mxu0 %v1818
        %1844 = vmatprep.subr.bf16.mxu0 0
        %1845 = vmatpush1.bf16.msra.mxu0 %v1817
        %1846 = vmatprep.subr.bf16.mxu0 0
        %1847 = vmatpush1.bf16.msra.mxu0 %v1816
        %1848 = vmatprep.subr.bf16.mxu0 0
        %1849 = vmatpush2.bf16.msra.mxu0 0
        %1850 = vmatprep.subr.bf16.mxu0 0
        %1851 = vmatpush2.bf16.msra.mxu0 0
        %1852 = vmatprep.subr.bf16.mxu0 0
        %1853 = vmatpush2.bf16.msra.mxu0 0
        %1854 = vmatprep.subr.bf16.mxu0 0
        %1855 = vmatpush2.bf16.msra.mxu0 0
        %1856 = vmatprep.subr.bf16.mxu0 0
        %1857 = vmatpush2.bf16.msra.mxu0 0
        %1858 = vmatprep.subr.bf16.mxu0 0
        %1859 = vmatpush2.bf16.msra.mxu0 0
        %1860 = vmatprep.subr.bf16.mxu0 0
        %1861 = vmatpush2.bf16.msra.mxu0 0
        %1862 = vmatprep.subr.bf16.mxu0 0
        %1863 = vmatpush2.bf16.msra.mxu0 0
        %1864 = vmatprep.mubr.bf16.mxu0 0
        %1865 = vmatmul.mubr.bf16.gmra.mxu0 %v1763
        %v1866 = vpop.f32.mrf.mxu0
        %v1867 = vadd.f32 %v1783, %v1866
        %v1868 = vpop.f32.mrf.mxu0
        %v1869 = vpop.f32.mrf.mxu0
        %v1870 = vpop.f32.mrf.mxu0
        %1871 = vdwg.mxu0
        %v1872 = vadd.f32 %v1674, %v1867
        %1873 = vst.msk [vmem:[#allocation2] sm:$0xff] %vm482, %v1872
        %p1874 = scmp.eq.s32.totalorder %s28, 1
        // Predicated region
        $region61: #{tpu_custom_call.1} parent=55 // pred_check
          %p1875 = pneg %p1874
        $region62: #{tpu_custom_call.1} parent=55 // pred_check_branch
          %1877 = sbr.rel (%p1875) target = $region64
        $region63: #{tpu_custom_call.1} parent=55 // pred_region
          %v1878 = vld [vmem:[%s8] sm:$0x1]
          %v1879 = vld [vmem:[%s8 + $0x1] sm:$0x1]
          %v1880 = vsel %vm482, %v1872, 0.0
          %1881 = vadd.xlane.f32.xlu0 %v1880
          %v1882 = vpop.xlane.xlu0 %1881
          %v1883 = vmul.f32 %v1882, %v486
          %v1884 = vsub.f32 %v1872, %v1883
          %v1885 = vmul.f32 %v1884, %v1884
          %v1886 = vsel %vm482, %v1885, 0.0
          %1887 = vadd.xlane.f32.xlu0 %v1886
          %v1888 = vpop.xlane.xlu0 %1887
          %v1889 = vmul.f32 %v1888, %v486
          %v1890 = vadd.f32 %v1889, 1e-06
          %v1891 = vrsqrt.pop %v1890
          %v1892 = vmul.f32 %v1884, %v1891
          %v1893 = vlaneseq
          %v1894 = vshrl.u32 %v1893, 7
          %v1895 = vsub.s32 0, %v1894
          %v1896 = vrot.slane %v1878, %v1895
          %v1897 = vmul.f32 %v1892, %v1896
          %v1898 = vlaneseq
          %v1899 = vshrl.u32 %v1898, 7
          %v1900 = vsub.s32 0, %v1899
          %v1901 = vrot.slane %v1879, %v1900
          %v1902 = vadd.f32 %v1897, %v1901
          %1903 = vst.msk [vmem:[%s432] sm:$0xff] %vm482, %v1902
        $region64: #{tpu_custom_call.1} parent=55 // pred_fallthru
          _
        %s1904 = sand.u32 %s272, 1
        %s1905 = scalar_lea.sflag [#allocation4], %s1904
        %s1906 = sand.u32 %s272, 1
        %s1907 = smul.addr %s1906, 8
        %s1908 = scalar_lea.vmem [#allocation3], %s1907
        // Predicated region
        $region65: #{tpu_custom_call.1} parent=55 // pred_check
          %p1909 = pneg %p282
        $region66: #{tpu_custom_call.1} parent=55 // pred_check_branch
          %1911 = sbr.rel (%p1909) target = $region68
        $region67: #{tpu_custom_call.1} parent=55 // pred_region
          %s1913 = ssub.s32 128, 128
          %1914 = vsyncadd %s1905, %s1913
          %s1915 = smul.addr %s27, 128
          %s1916 = scalar_lea.hbm %s9, %s1915
          %s1918 = sshll.u32 %s1908, 4
          %s1919 = int_to_ptr.vmem [resolvable:$true] %s1918
          %1921 = dma.vmem_to_hbm [thread:$0]  %s1919, 128, %s1916, %s1905
        $region68: #{tpu_custom_call.1} parent=55 // pred_fallthru
          _
      $region56: #{tpu_custom_call.1} parent=5 // pred_fallthru
        _
      %p1922 = scmp.le.s32.totalorder 2, %s18
      // Predicated region
      $region69: #{tpu_custom_call.1} parent=5 // pred_check
        %p1923 = pneg %p1922
      $region70: #{tpu_custom_call.1} parent=5 // pred_check_branch
        %1925 = sbr.rel (%p1923) target = $region72
      $region71: #{tpu_custom_call.1} parent=5 // pred_region
        %s1926 = ssub.s32 %s18, 2
        // Predicated region
        $region73: #{tpu_custom_call.1} parent=71 // pred_check
          %p1927 = pneg %p288
        $region74: #{tpu_custom_call.1} parent=71 // pred_check_branch
          %1929 = sbr.rel (%p1927) target = $region76
        $region75: #{tpu_custom_call.1} parent=71 // pred_region
          %s1930 = sand.u32 %s273, 1
          %s1931 = scalar_lea.sflag [#allocation4], %s1930
          %s1932 = sand.u32 %s273, 1
          %s1933 = smul.addr %s1932, 8
          %s1934 = scalar_lea.vmem [#allocation3], %s1933
          %1935 = dma.done %s1931, 128
        $region76: #{tpu_custom_call.1} parent=71 // pred_fallthru
          _
      $region72: #{tpu_custom_call.1} parent=5 // pred_fallthru
        _
    $region6: #{tpu_custom_call.1} parent=1 // loop_footer
      %s22 = sadd.s32 1, %s18
    $region7: #{tpu_custom_call.1} parent=1 // loop_footer_branch
      %17 = sbr.rel target = $region3
    $region8: #{tpu_custom_call.1} parent=1 // loop_exit
      _
    %1936 = vsyncpa [#allocation4], 1
    %s1937 = scalar_lea.sflag [#allocation4], 1
    %1938 = vsyncpa %s1937, 1

</llo_original>
